<compile_context>
chip_gen: v6e
topology: v6e:2x2x1
jax: 0.10.0
libtpu: 0.0.40
codegen_flags: <defaults>
</compile_context>

<pallas_src>
import jax
import jax.numpy as jnp
from jax import lax
from jax.experimental import pallas as pl
from jax.experimental.pallas import tpu as pltpu

HIDDEN = 512
IN_FEATS = 19
USE_FEATS = 12
K_PAD = 24                 # 19 features + 1 ones-column + 4 zero pad (multiple of 8)
ONES_COL = IN_FEATS        # column 19 of the augmented input holds the constant 1
BN_EPS = 1e-5


def mymodel_kernel(x_ref, sel_ref, w1_ref, w2_ref, w3_ref, pack_ref, drop_ref,
                   out_ref):
    # x_ref:    (B, 24)   augmented input (features, ones col, zero pad)
    # sel_ref:  (24, 12)  selection * 1/(max-min), with -min/(max-min) bias row
    # w1_ref:   (12, 512), w2_ref/w3_ref: (512, 512)
    # pack_ref: (11, 512) rows = b1,g1,be1, b2,g2,be2, b3,g3,be3, w4_row, b4
    # drop_ref: (2, B, 512) inverted-dropout scales in {0.0, 2.0}
    x = x_ref[...]

    # Selection + diff_hi_pressure + normalisation as one small matmul.
    use_x = jnp.dot(x, sel_ref[...], preferred_element_type=jnp.float32)  # (B,12)

    # XTXXT trick: bmm(u, u^T) is the per-row squared norm; bmm(u^T, result)
    # -> u * ||u||^2.
    sq = jnp.sum(use_x * use_x, axis=-1, keepdims=True)                   # (B,1)
    final_x = use_x * sq                                                  # (B,12)

    pack = pack_ref[...]                                                  # (11,512)
    b1, g1, be1 = pack[0:1], pack[1:2], pack[2:3]
    b2, g2, be2 = pack[3:4], pack[4:5], pack[5:6]
    b3, g3, be3 = pack[6:7], pack[7:8], pack[8:9]
    w4_row = pack[9:10]                                                   # (1,512)
    b4 = pack[10:11, 0:1]                                                 # (1,1)

    def bn_train(h, gamma, beta):
        # Training-mode BatchNorm1d with batch statistics (biased variance),
        # fused into a single FMA: h * scale + shift.
        mean = jnp.mean(h, axis=0, keepdims=True)
        var = jnp.mean(h * h, axis=0, keepdims=True) - mean * mean
        scale = gamma * lax.rsqrt(var + BN_EPS)
        shift = beta - mean * scale
        return h * scale + shift

    # Layer 1: Linear(12,512) + BN + Tanh
    h = jnp.dot(final_x, w1_ref[...], preferred_element_type=jnp.float32) + b1
    h = jnp.tanh(bn_train(h, g1, be1))

    # Layer 2: Linear(512,512) + BN + ReLU + Dropout(0.5)
    h = jnp.dot(h, w2_ref[...], preferred_element_type=jnp.float32) + b2
    h = jnp.maximum(bn_train(h, g2, be2), 0.0)
    h = h * drop_ref[0]

    # Layer 3: Linear(512,512) + BN + ReLU + Dropout(0.5)
    h = jnp.dot(h, w3_ref[...], preferred_element_type=jnp.float32) + b3
    h = jnp.maximum(bn_train(h, g3, be3), 0.0)
    h = h * drop_ref[1]

    # Output: Linear(512,1) as a lane reduction (avoids a 1-column MXU pass).
    out_ref[...] = jnp.sum(h * w4_row, axis=-1, keepdims=True) + b4


def build_sel_aug():
    """(K_PAD, 12) matrix folding column selection, diff_hi_pressure,
    and (t - min) / (max - min) normalisation (bias goes in the ones row)."""
    # (x column, use_X column, sign)
    entries = [
        (1, 0, 1.0), (2, 1, 1.0), (3, 2, 1.0), (8, 3, 1.0),
        (9, 4, 1.0), (9, 5, 1.0), (11, 5, -1.0),
        (12, 6, 1.0), (13, 7, 1.0), (14, 8, 1.0),
        (16, 9, 1.0), (17, 10, 1.0), (18, 11, 1.0),
    ]
    mins = jnp.array([-40.0, 18.0, 18.0, 100.0, 900.0, -1000.0,
                      -30.0, 10.0, 10.0, 40.0, -18.0, 20.0], jnp.float32)
    maxs = jnp.array([55.0, 32.0, 32.0, 700.0, 2400.0, 1000.0,
                      65.0, 45.0, 45.0, 115.0, 31.0, 65.0], jnp.float32)
    cinv = 1.0 / (maxs - mins)

    sel = jnp.zeros((K_PAD, USE_FEATS), jnp.float32)
    for r, c, v in entries:
        sel = sel.at[r, c].add(v * float(cinv[c]))
    sel = sel.at[ONES_COL, :].set(-mins * cinv)   # bias row
    return sel


def xavier_uniform(key, fan_in, fan_out):
    bound = (6.0 / (fan_in + fan_out)) ** 0.5
    return jax.random.uniform(key, (fan_in, fan_out), jnp.float32, -bound, bound)


def build_mlp_params(key):
    ks = jax.random.split(key, 4)
    dims = [(USE_FEATS, HIDDEN), (HIDDEN, HIDDEN), (HIDDEN, HIDDEN), (HIDDEN, 1)]
    w1, w2, w3, w4 = [xavier_uniform(k, fi, fo) for k, (fi, fo) in zip(ks, dims)]
    # PyTorch-default-ish: zero linear biases, BN gamma=1 / beta=0.
    b = jnp.zeros((1, HIDDEN), jnp.float32)
    g = jnp.ones((1, HIDDEN), jnp.float32)
    be = jnp.zeros((1, HIDDEN), jnp.float32)
    b4_scalar = 0.0
    pack = jnp.concatenate(
        [b, g, be,                       # layer 1: b1, gamma1, beta1
         b, g, be,                       # layer 2
         b, g, be,                       # layer 3
         w4.reshape(1, HIDDEN),          # output weight as a row
         jnp.full((1, HIDDEN), b4_scalar, jnp.float32)],  # output bias (lane 0 used)
        axis=0)                          # (11, 512)
    return w1, w2, w3, pack


def mymodel_forward(x, drop_scale, sel_aug, w1, w2, w3, pack):
    B = x.shape[0]
    # Augment: real features | ones (bias pickup) | zero pad to K_PAD.
    x_aug = jnp.concatenate(
        [x.astype(jnp.float32),
         jnp.ones((B, 1), jnp.float32),
         jnp.zeros((B, K_PAD - IN_FEATS - 1), jnp.float32)], axis=1)

    vmem = pl.BlockSpec(memory_space=pltpu.MemorySpace.VMEM)
    return pl.pallas_call(
        mymodel_kernel,
        out_shape=jax.ShapeDtypeStruct((B, 1), jnp.float32),
        in_specs=[vmem] * 7,
        out_specs=vmem,
    )(x_aug, sel_aug, w1, w2, w3, pack, drop_scale)


if __name__ == "__main__":
    key = jax.random.PRNGKey(0)
    k_x, k_mlp, k_drop = jax.random.split(key, 3)

    B = 8
    # Plausible (B, 19) input covering the physical ranges the model normalises.
    x = jax.random.uniform(k_x, (B, IN_FEATS), jnp.float32, -50.0, 50.0)
    x = x.at[:, 8].set(jnp.abs(x[:, 8]) * 10.0 + 100.0)    # lo_pressure
    x = x.at[:, 9].set(jnp.abs(x[:, 9]) * 30.0 + 900.0)    # hi_pressure
    x = x.at[:, 11].set(jnp.abs(x[:, 11]) * 30.0 + 900.0)  # aim_hi_pressure

    sel_aug = build_sel_aug()
    w1, w2, w3, pack = build_mlp_params(k_mlp)

    # Inverted dropout p=0.5: scale is 2.0 where kept, 0.0 where dropped.
    keep = jax.random.bernoulli(k_drop, 0.5, (2, B, HIDDEN))
    drop_scale = keep.astype(jnp.float32) * 2.0

    out = mymodel_forward(x, drop_scale, sel_aug, w1, w2, w3, pack)
    out = jax.block_until_ready(out)
    assert out.shape == (B, 1) and out.dtype == jnp.float32
    assert bool(jnp.all(jnp.isfinite(out)))
    print("KERNEL_OK")
</pallas_src>

<mosaic_0001>
module attributes {stable_mosaic.version = 11 : i64} {
  func.func @mymodel_kernel(%arg0: memref<8x24xf32, #tpu.memory_space<vmem>>, %arg1: memref<24x12xf32, #tpu.memory_space<vmem>>, %arg2: memref<12x512xf32, #tpu.memory_space<vmem>>, %arg3: memref<512x512xf32, #tpu.memory_space<vmem>>, %arg4: memref<512x512xf32, #tpu.memory_space<vmem>>, %arg5: memref<11x512xf32, #tpu.memory_space<vmem>>, %arg6: memref<2x8x512xf32, #tpu.memory_space<vmem>>, %arg7: memref<8x1xf32, #tpu.memory_space<vmem>>) attributes {dimension_semantics = [], scalar_prefetch = 0 : i64, scratch_operands = 0 : i64, tpu.core_type = #tpu.core_type<tc>} {
    %c0 = arith.constant 0 : index
    %c0_0 = arith.constant 0 : index
    %0 = vector.load %arg0[%c0, %c0_0] : memref<8x24xf32, #tpu.memory_space<vmem>>, vector<8x24xf32>
    %c0_1 = arith.constant 0 : index
    %c0_2 = arith.constant 0 : index
    %1 = vector.load %arg1[%c0_1, %c0_2] : memref<24x12xf32, #tpu.memory_space<vmem>>, vector<24x12xf32>
    %cst = arith.constant dense<0.000000e+00> : vector<8x12xf32>
    %2 = tpu.matmul %0, %1, %cst {dimension_numbers = #tpu.dot_dimension_numbers<[1], [0], [0], [1], [0, 0, 1, 1], [], []>} : vector<8x24xf32>, vector<24x12xf32>, vector<8x12xf32> -> vector<8x12xf32>
    %3 = arith.mulf %2, %2 : vector<8x12xf32>
    %cst_3 = arith.constant dense<0.000000e+00> : vector<8xf32>
    %4 = vector.multi_reduction <add>, %3, %cst_3 [1] : vector<8x12xf32> to vector<8xf32>
    %5 = vector.shape_cast %4 : vector<8xf32> to vector<8x1xf32>
    %6 = vector.broadcast %5 : vector<8x1xf32> to vector<8x12xf32>
    %7 = arith.mulf %2, %6 : vector<8x12xf32>
    %c0_4 = arith.constant 0 : index
    %c0_5 = arith.constant 0 : index
    %8 = vector.load %arg5[%c0_4, %c0_5] : memref<11x512xf32, #tpu.memory_space<vmem>>, vector<11x512xf32>
    %9 = vector.extract_strided_slice %8 {offsets = [0, 0], sizes = [1, 512], strides = [1, 1]} : vector<11x512xf32> to vector<1x512xf32>
    %10 = vector.extract_strided_slice %8 {offsets = [1, 0], sizes = [1, 512], strides = [1, 1]} : vector<11x512xf32> to vector<1x512xf32>
    %11 = vector.extract_strided_slice %8 {offsets = [2, 0], sizes = [1, 512], strides = [1, 1]} : vector<11x512xf32> to vector<1x512xf32>
    %12 = vector.extract_strided_slice %8 {offsets = [3, 0], sizes = [1, 512], strides = [1, 1]} : vector<11x512xf32> to vector<1x512xf32>
    %13 = vector.extract_strided_slice %8 {offsets = [4, 0], sizes = [1, 512], strides = [1, 1]} : vector<11x512xf32> to vector<1x512xf32>
    %14 = vector.extract_strided_slice %8 {offsets = [5, 0], sizes = [1, 512], strides = [1, 1]} : vector<11x512xf32> to vector<1x512xf32>
    %15 = vector.extract_strided_slice %8 {offsets = [6, 0], sizes = [1, 512], strides = [1, 1]} : vector<11x512xf32> to vector<1x512xf32>
    %16 = vector.extract_strided_slice %8 {offsets = [7, 0], sizes = [1, 512], strides = [1, 1]} : vector<11x512xf32> to vector<1x512xf32>
    %17 = vector.extract_strided_slice %8 {offsets = [8, 0], sizes = [1, 512], strides = [1, 1]} : vector<11x512xf32> to vector<1x512xf32>
    %18 = vector.extract_strided_slice %8 {offsets = [9, 0], sizes = [1, 512], strides = [1, 1]} : vector<11x512xf32> to vector<1x512xf32>
    %19 = vector.extract_strided_slice %8 {offsets = [10, 0], sizes = [1, 1], strides = [1, 1]} : vector<11x512xf32> to vector<1x1xf32>
    %c0_6 = arith.constant 0 : index
    %c0_7 = arith.constant 0 : index
    %20 = vector.load %arg2[%c0_6, %c0_7] : memref<12x512xf32, #tpu.memory_space<vmem>>, vector<12x512xf32>
    %cst_8 = arith.constant dense<0.000000e+00> : vector<8x512xf32>
    %21 = tpu.matmul %7, %20, %cst_8 {dimension_numbers = #tpu.dot_dimension_numbers<[1], [0], [0], [1], [0, 0, 1, 1], [], []>} : vector<8x12xf32>, vector<12x512xf32>, vector<8x512xf32> -> vector<8x512xf32>
    %22 = vector.broadcast %9 : vector<1x512xf32> to vector<8x512xf32>
    %23 = arith.addf %21, %22 : vector<8x512xf32>
    %cst_9 = arith.constant dense<0.000000e+00> : vector<512xf32>
    %24 = vector.multi_reduction <add>, %23, %cst_9 [0] : vector<8x512xf32> to vector<512xf32>
    %25 = vector.shape_cast %24 : vector<512xf32> to vector<1x512xf32>
    %cst_10 = arith.constant 8.000000e+00 : f32
    %26 = vector.broadcast %cst_10 : f32 to vector<1x512xf32>
    %27 = arith.divf %25, %26 : vector<1x512xf32>
    %28 = arith.mulf %23, %23 : vector<8x512xf32>
    %cst_11 = arith.constant dense<0.000000e+00> : vector<512xf32>
    %29 = vector.multi_reduction <add>, %28, %cst_11 [0] : vector<8x512xf32> to vector<512xf32>
    %30 = vector.shape_cast %29 : vector<512xf32> to vector<1x512xf32>
    %cst_12 = arith.constant 8.000000e+00 : f32
    %31 = vector.broadcast %cst_12 : f32 to vector<1x512xf32>
    %32 = arith.divf %30, %31 : vector<1x512xf32>
    %33 = arith.mulf %27, %27 : vector<1x512xf32>
    %34 = arith.subf %32, %33 : vector<1x512xf32>
    %cst_13 = arith.constant 9.99999974E-6 : f32
    %35 = vector.broadcast %cst_13 : f32 to vector<1x512xf32>
    %36 = arith.addf %34, %35 : vector<1x512xf32>
    %37 = math.rsqrt %36 : vector<1x512xf32>
    %38 = arith.mulf %10, %37 : vector<1x512xf32>
    %39 = arith.mulf %27, %38 : vector<1x512xf32>
    %40 = arith.subf %11, %39 : vector<1x512xf32>
    %41 = vector.broadcast %38 : vector<1x512xf32> to vector<8x512xf32>
    %42 = arith.mulf %23, %41 : vector<8x512xf32>
    %43 = vector.broadcast %40 : vector<1x512xf32> to vector<8x512xf32>
    %44 = arith.addf %42, %43 : vector<8x512xf32>
    %45 = math.tanh %44 : vector<8x512xf32>
    %c0_14 = arith.constant 0 : index
    %c0_15 = arith.constant 0 : index
    %46 = vector.load %arg3[%c0_14, %c0_15] : memref<512x512xf32, #tpu.memory_space<vmem>>, vector<512x512xf32>
    %cst_16 = arith.constant dense<0.000000e+00> : vector<8x512xf32>
    %47 = tpu.matmul %45, %46, %cst_16 {dimension_numbers = #tpu.dot_dimension_numbers<[1], [0], [0], [1], [0, 0, 1, 1], [], []>} : vector<8x512xf32>, vector<512x512xf32>, vector<8x512xf32> -> vector<8x512xf32>
    %48 = vector.broadcast %12 : vector<1x512xf32> to vector<8x512xf32>
    %49 = arith.addf %47, %48 : vector<8x512xf32>
    %cst_17 = arith.constant dense<0.000000e+00> : vector<512xf32>
    %50 = vector.multi_reduction <add>, %49, %cst_17 [0] : vector<8x512xf32> to vector<512xf32>
    %51 = vector.shape_cast %50 : vector<512xf32> to vector<1x512xf32>
    %cst_18 = arith.constant 8.000000e+00 : f32
    %52 = vector.broadcast %cst_18 : f32 to vector<1x512xf32>
    %53 = arith.divf %51, %52 : vector<1x512xf32>
    %54 = arith.mulf %49, %49 : vector<8x512xf32>
    %cst_19 = arith.constant dense<0.000000e+00> : vector<512xf32>
    %55 = vector.multi_reduction <add>, %54, %cst_19 [0] : vector<8x512xf32> to vector<512xf32>
    %56 = vector.shape_cast %55 : vector<512xf32> to vector<1x512xf32>
    %cst_20 = arith.constant 8.000000e+00 : f32
    %57 = vector.broadcast %cst_20 : f32 to vector<1x512xf32>
    %58 = arith.divf %56, %57 : vector<1x512xf32>
    %59 = arith.mulf %53, %53 : vector<1x512xf32>
    %60 = arith.subf %58, %59 : vector<1x512xf32>
    %cst_21 = arith.constant 9.99999974E-6 : f32
    %61 = vector.broadcast %cst_21 : f32 to vector<1x512xf32>
    %62 = arith.addf %60, %61 : vector<1x512xf32>
    %63 = math.rsqrt %62 : vector<1x512xf32>
    %64 = arith.mulf %13, %63 : vector<1x512xf32>
    %65 = arith.mulf %53, %64 : vector<1x512xf32>
    %66 = arith.subf %14, %65 : vector<1x512xf32>
    %67 = vector.broadcast %64 : vector<1x512xf32> to vector<8x512xf32>
    %68 = arith.mulf %49, %67 : vector<8x512xf32>
    %69 = vector.broadcast %66 : vector<1x512xf32> to vector<8x512xf32>
    %70 = arith.addf %68, %69 : vector<8x512xf32>
    %cst_22 = arith.constant 0.000000e+00 : f32
    %71 = vector.broadcast %cst_22 : f32 to vector<8x512xf32>
    %72 = arith.maximumf %70, %71 : vector<8x512xf32>
    %c0_23 = arith.constant 0 : index
    %c0_24 = arith.constant 0 : index
    %c0_25 = arith.constant 0 : index
    %73 = vector.load %arg6[%c0_23, %c0_24, %c0_25] : memref<2x8x512xf32, #tpu.memory_space<vmem>>, vector<1x8x512xf32>
    %74 = vector.shape_cast %73 : vector<1x8x512xf32> to vector<8x512xf32>
    %75 = arith.mulf %72, %74 : vector<8x512xf32>
    %c0_26 = arith.constant 0 : index
    %c0_27 = arith.constant 0 : index
    %76 = vector.load %arg4[%c0_26, %c0_27] : memref<512x512xf32, #tpu.memory_space<vmem>>, vector<512x512xf32>
    %cst_28 = arith.constant dense<0.000000e+00> : vector<8x512xf32>
    %77 = tpu.matmul %75, %76, %cst_28 {dimension_numbers = #tpu.dot_dimension_numbers<[1], [0], [0], [1], [0, 0, 1, 1], [], []>} : vector<8x512xf32>, vector<512x512xf32>, vector<8x512xf32> -> vector<8x512xf32>
    %78 = vector.broadcast %15 : vector<1x512xf32> to vector<8x512xf32>
    %79 = arith.addf %77, %78 : vector<8x512xf32>
    %cst_29 = arith.constant dense<0.000000e+00> : vector<512xf32>
    %80 = vector.multi_reduction <add>, %79, %cst_29 [0] : vector<8x512xf32> to vector<512xf32>
    %81 = vector.shape_cast %80 : vector<512xf32> to vector<1x512xf32>
    %cst_30 = arith.constant 8.000000e+00 : f32
    %82 = vector.broadcast %cst_30 : f32 to vector<1x512xf32>
    %83 = arith.divf %81, %82 : vector<1x512xf32>
    %84 = arith.mulf %79, %79 : vector<8x512xf32>
    %cst_31 = arith.constant dense<0.000000e+00> : vector<512xf32>
    %85 = vector.multi_reduction <add>, %84, %cst_31 [0] : vector<8x512xf32> to vector<512xf32>
    %86 = vector.shape_cast %85 : vector<512xf32> to vector<1x512xf32>
    %cst_32 = arith.constant 8.000000e+00 : f32
    %87 = vector.broadcast %cst_32 : f32 to vector<1x512xf32>
    %88 = arith.divf %86, %87 : vector<1x512xf32>
    %89 = arith.mulf %83, %83 : vector<1x512xf32>
    %90 = arith.subf %88, %89 : vector<1x512xf32>
    %cst_33 = arith.constant 9.99999974E-6 : f32
    %91 = vector.broadcast %cst_33 : f32 to vector<1x512xf32>
    %92 = arith.addf %90, %91 : vector<1x512xf32>
    %93 = math.rsqrt %92 : vector<1x512xf32>
    %94 = arith.mulf %16, %93 : vector<1x512xf32>
    %95 = arith.mulf %83, %94 : vector<1x512xf32>
    %96 = arith.subf %17, %95 : vector<1x512xf32>
    %97 = vector.broadcast %94 : vector<1x512xf32> to vector<8x512xf32>
    %98 = arith.mulf %79, %97 : vector<8x512xf32>
    %99 = vector.broadcast %96 : vector<1x512xf32> to vector<8x512xf32>
    %100 = arith.addf %98, %99 : vector<8x512xf32>
    %cst_34 = arith.constant 0.000000e+00 : f32
    %101 = vector.broadcast %cst_34 : f32 to vector<8x512xf32>
    %102 = arith.maximumf %100, %101 : vector<8x512xf32>
    %c1 = arith.constant 1 : index
    %c0_35 = arith.constant 0 : index
    %c0_36 = arith.constant 0 : index
    %103 = vector.load %arg6[%c1, %c0_35, %c0_36] : memref<2x8x512xf32, #tpu.memory_space<vmem>>, vector<1x8x512xf32>
    %104 = vector.shape_cast %103 : vector<1x8x512xf32> to vector<8x512xf32>
    %105 = arith.mulf %102, %104 : vector<8x512xf32>
    %106 = vector.broadcast %18 : vector<1x512xf32> to vector<8x512xf32>
    %107 = arith.mulf %105, %106 : vector<8x512xf32>
    %cst_37 = arith.constant dense<0.000000e+00> : vector<8xf32>
    %108 = vector.multi_reduction <add>, %107, %cst_37 [1] : vector<8x512xf32> to vector<8xf32>
    %109 = vector.shape_cast %108 : vector<8xf32> to vector<8x1xf32>
    %110 = vector.broadcast %19 : vector<1x1xf32> to vector<8x1xf32>
    %111 = arith.addf %109, %110 : vector<8x1xf32>
    %c0_38 = arith.constant 0 : index
    %c0_39 = arith.constant 0 : index
    %112 = vector.load %arg7[%c0_38, %c0_39] : memref<8x1xf32, #tpu.memory_space<vmem>>, vector<8x1xf32>
    tpu.vector_store %arg7[%c0_38, %c0_39], %111 {strides = array<i32>} : memref<8x1xf32, #tpu.memory_space<vmem>>, vector<8x1xf32>,
    return
  }
}

</mosaic_0001>

<llo_original>
// kernel: tpu_custom_call.1
$region0: #{tpu_custom_call.1}
  #allocation0 [shape = 'u32[]', space=smem, size = 0x4, offset = 0x4, fixed_abs, tag = 'smem constant byte address 0x4 - core index']
  #allocation1 [shape = 'u32[144,128]{1,0:T(1,128)}', space=vmem, size = 0x12000, scoped, tag = 'internal scratch']
  %s0 = inlined_call_operand.vmem [shape: f32[8,24], index: 0, kind: input, shape index: {}]
  %s1 = inlined_call_operand.vmem [shape: f32[24,12], index: 1, kind: input, shape index: {}]
  %s2 = inlined_call_operand.hbm [shape: f32[12,512], index: 2, kind: input, shape index: {}]
  %s3 = inlined_call_operand.hbm [shape: f32[512,512], index: 3, kind: input, shape index: {}]
  %s4 = inlined_call_operand.hbm [shape: f32[512,512], index: 4, kind: input, shape index: {}]
  %s5 = inlined_call_operand.hbm [shape: f32[11,512], index: 5, kind: input, shape index: {}]
  %s6 = inlined_call_operand.hbm [shape: f32[2,8,512], index: 6, kind: input, shape index: {}]
  %s7 = inlined_call_operand.vmem [shape: f32[8,1], index: 7, kind: output, shape index: {}]
  %s8 = sld [smem:[#allocation0]]
  $region58: #{tpu_custom_call.1} parent=0
    _
  %s10 = ssub.s32 1, %s8
  %s11 = scalar_select 0, %s10, %s8
  $region1: #{tpu_custom_call.1} parent=0
    #allocation2 [shape = 'u8[32768]{0}', space=vmem, size = 0x8000, scoped, tag = 'input window, operand 2, single buffered']
    #allocation3 [shape = 's32[1]{0}', space=sflag, size = 0x4, scoped, tag = 'scoped memory for tpu_custom_call.1']
    #allocation4 [shape = 'u8[1048576]{0}', space=vmem, size = 0x100000, scoped, tag = 'input window, operand 3, single buffered']
    #allocation5 [shape = 's32[1]{0}', space=sflag, size = 0x4, scoped, tag = 'scoped memory for tpu_custom_call.1']
    #allocation6 [shape = 'u8[1048576]{0}', space=vmem, size = 0x100000, scoped, tag = 'input window, operand 4, single buffered']
    #allocation7 [shape = 'u8[32768]{0}', space=vmem, size = 0x8000, scoped, tag = 'input window, operand 5, single buffered']
    #allocation8 [shape = 's32[1]{0}', space=sflag, size = 0x4, scoped, tag = 'scoped memory for tpu_custom_call.1']
    #allocation9 [shape = 'u8[32768]{0}', space=vmem, size = 0x8000, scoped, tag = 'input window, operand 6, single buffered']
    %12 = vsyncpa [#allocation3], 0
    %13 = vsyncpa [#allocation5], 0
    %14 = vsyncpa [#allocation8], 0
    // Predicated region
    $region2: #{tpu_custom_call.1} parent=1 // pred_check
      _
    $region3: #{tpu_custom_call.1} parent=1 // pred_check_branch
      %16 = sbr.rel (0) target = $region5
    $region4: #{tpu_custom_call.1} parent=1 // pred_region
      _
    $region5: #{tpu_custom_call.1} parent=1 // pred_fallthru
      _
    // Predicated region
    $region6: #{tpu_custom_call.1} parent=1 // pred_check
      _
    $region7: #{tpu_custom_call.1} parent=1 // pred_check_branch
      %18 = sbr.rel (0) target = $region9
    $region8: #{tpu_custom_call.1} parent=1 // pred_region
      _
    $region9: #{tpu_custom_call.1} parent=1 // pred_fallthru
      _
    // Predicated region
    $region10: #{tpu_custom_call.1} parent=1 // pred_check
      _
    $region11: #{tpu_custom_call.1} parent=1 // pred_check_branch
      %20 = sbr.rel (0) target = $region13
    $region12: #{tpu_custom_call.1} parent=1 // pred_region
      %s22 = ssub.s32 1024, 1024
      %23 = vsyncadd [#allocation3], %s22
      %s24 = sshll.u32 [#allocation2], 4
      %s25 = int_to_ptr.vmem [resolvable:$true] %s24
      %30 = dma.hbm_to_vmem [thread:$0]  %s2, 1024, %s25, [#allocation3], 512, 512, 32
    $region13: #{tpu_custom_call.1} parent=1 // pred_fallthru
      _
    // Predicated region
    $region14: #{tpu_custom_call.1} parent=1 // pred_check
      _
    $region15: #{tpu_custom_call.1} parent=1 // pred_check_branch
      %32 = sbr.rel (0) target = $region17
    $region16: #{tpu_custom_call.1} parent=1 // pred_region
      %s34 = ssub.s32 32768, 32768
      %35 = vsyncadd [#allocation5], %s34
      %s36 = sshll.u32 [#allocation4], 4
      %s37 = int_to_ptr.vmem [resolvable:$true] %s36
      %42 = dma.hbm_to_vmem [thread:$0]  %s3, 32768, %s37, [#allocation5], 512, 512, 32
    $region17: #{tpu_custom_call.1} parent=1 // pred_fallthru
      _
    // Predicated region
    $region18: #{tpu_custom_call.1} parent=1 // pred_check
      _
    $region19: #{tpu_custom_call.1} parent=1 // pred_check_branch
      %44 = sbr.rel (0) target = $region21
    $region20: #{tpu_custom_call.1} parent=1 // pred_region
      %s46 = ssub.s32 32768, 32768
      %47 = vsyncadd [#allocation5], %s46
      %s48 = sshll.u32 [#allocation6], 4
      %s49 = int_to_ptr.vmem [resolvable:$true] %s48
      %54 = dma.hbm_to_vmem [thread:$0]  %s4, 32768, %s49, [#allocation5], 512, 512, 32
    $region21: #{tpu_custom_call.1} parent=1 // pred_fallthru
      _
    // Predicated region
    $region22: #{tpu_custom_call.1} parent=1 // pred_check
      _
    $region23: #{tpu_custom_call.1} parent=1 // pred_check_branch
      %56 = sbr.rel (0) target = $region25
    $region24: #{tpu_custom_call.1} parent=1 // pred_region
      %s58 = ssub.s32 1024, 1024
      %59 = vsyncadd [#allocation8], %s58
      %s60 = sshll.u32 [#allocation7], 4
      %s61 = int_to_ptr.vmem [resolvable:$true] %s60
      %66 = dma.hbm_to_vmem [thread:$0]  %s5, 1024, %s61, [#allocation8], 512, 512, 32
    $region25: #{tpu_custom_call.1} parent=1 // pred_fallthru
      _
    // Predicated region
    $region26: #{tpu_custom_call.1} parent=1 // pred_check
      _
    $region27: #{tpu_custom_call.1} parent=1 // pred_check_branch
      %68 = sbr.rel (0) target = $region29
    $region28: #{tpu_custom_call.1} parent=1 // pred_region
      %s70 = ssub.s32 1024, 1024
      %71 = vsyncadd [#allocation8], %s70
      %s72 = sshll.u32 [#allocation9], 4
      %s73 = int_to_ptr.vmem [resolvable:$true] %s72
      %78 = dma.hbm_to_vmem [thread:$0]  %s6, 1024, %s73, [#allocation8], 512, 512, 32
    $region29: #{tpu_custom_call.1} parent=1 // pred_fallthru
      _
    // Predicated region
    $region30: #{tpu_custom_call.1} parent=1 // pred_check
      _
    $region31: #{tpu_custom_call.1} parent=1 // pred_check_branch
      %80 = sbr.rel (0) target = $region33
    $region32: #{tpu_custom_call.1} parent=1 // pred_region
      %81 = dma.done [#allocation3], 1024
    $region33: #{tpu_custom_call.1} parent=1 // pred_fallthru
      _
    // Predicated region
    $region34: #{tpu_custom_call.1} parent=1 // pred_check
      _
    $region35: #{tpu_custom_call.1} parent=1 // pred_check_branch
      %83 = sbr.rel (0) target = $region37
    $region36: #{tpu_custom_call.1} parent=1 // pred_region
      %84 = dma.done [#allocation5], 32768
    $region37: #{tpu_custom_call.1} parent=1 // pred_fallthru
      _
    // Predicated region
    $region38: #{tpu_custom_call.1} parent=1 // pred_check
      _
    $region39: #{tpu_custom_call.1} parent=1 // pred_check_branch
      %86 = sbr.rel (0) target = $region41
    $region40: #{tpu_custom_call.1} parent=1 // pred_region
      %87 = dma.done [#allocation5], 32768
    $region41: #{tpu_custom_call.1} parent=1 // pred_fallthru
      _
    // Predicated region
    $region42: #{tpu_custom_call.1} parent=1 // pred_check
      _
    $region43: #{tpu_custom_call.1} parent=1 // pred_check_branch
      %89 = sbr.rel (0) target = $region45
    $region44: #{tpu_custom_call.1} parent=1 // pred_region
      %90 = dma.done [#allocation8], 1024
    $region45: #{tpu_custom_call.1} parent=1 // pred_fallthru
      _
    // Predicated region
    $region46: #{tpu_custom_call.1} parent=1 // pred_check
      _
    $region47: #{tpu_custom_call.1} parent=1 // pred_check_branch
      %92 = sbr.rel (0) target = $region49
    $region48: #{tpu_custom_call.1} parent=1 // pred_region
      %93 = dma.done [#allocation8], 1024
    $region49: #{tpu_custom_call.1} parent=1 // pred_fallthru
      _
    %v94 = vld [vmem:[%s0] sm:$0xff]
    %v95 = vld [vmem:[%s1] sm:$0xff]
    %v96 = vld [vmem:[%s1 + $0x8] sm:$0xff]
    %v97 = vld [vmem:[%s1 + $0x10] sm:$0xff]
    %vm98 = vcmask 195584
    %v100 = vsel %vm98, %v94, 0
    %102 = vmatprep.subr.mxu0 0.0
    %103 = vmatpush1.msra.mxu0 0.0
    %104 = vmatprep.subr.mxu0 0.0
    %105 = vmatpush1.msra.mxu0 0.0
    %106 = vmatprep.subr.mxu0 0.0
    %107 = vmatpush1.msra.mxu0 0.0
    %108 = vmatprep.subr.mxu0 0.0
    %109 = vmatpush1.msra.mxu0 0.0
    %110 = vmatprep.subr.mxu0 0.0
    %111 = vmatpush1.msra.mxu0 0.0
    %112 = vmatprep.subr.mxu0 0.0
    %113 = vmatpush1.msra.mxu0 0.0
    %114 = vmatprep.subr.mxu0 0.0
    %115 = vmatpush1.msra.mxu0 0.0
    %116 = vmatprep.subr.mxu0 0.0
    %117 = vmatpush1.msra.mxu0 0.0
    %118 = vmatprep.subr.mxu0 0.0
    %119 = vmatpush1.msra.mxu0 0.0
    %120 = vmatprep.subr.mxu0 0.0
    %121 = vmatpush1.msra.mxu0 0.0
    %122 = vmatprep.subr.mxu0 0.0
    %123 = vmatpush1.msra.mxu0 0.0
    %124 = vmatprep.subr.mxu0 0.0
    %125 = vmatpush1.msra.mxu0 0.0
    %126 = vmatprep.subr.mxu0 0.0
    %127 = vmatpush1.msra.mxu0 0.0
    %128 = vmatprep.subr.mxu0 0.0
    %129 = vmatpush1.msra.mxu0 %v97
    %130 = vmatprep.subr.mxu0 0.0
    %131 = vmatpush1.msra.mxu0 %v96
    %132 = vmatprep.subr.mxu0 0.0
    %133 = vmatpush1.msra.mxu0 %v95
    %134 = vmatprep.subr.mxu0 0.0
    %135 = vmatpush2.msra.mxu0 0.0
    %136 = vmatprep.subr.mxu0 0.0
    %137 = vmatpush2.msra.mxu0 0.0
    %138 = vmatprep.subr.mxu0 0.0
    %139 = vmatpush2.msra.mxu0 0.0
    %140 = vmatprep.subr.mxu0 0.0
    %141 = vmatpush2.msra.mxu0 0.0
    %142 = vmatprep.subr.mxu0 0.0
    %143 = vmatpush2.msra.mxu0 0.0
    %144 = vmatprep.subr.mxu0 0.0
    %145 = vmatpush2.msra.mxu0 0.0
    %146 = vmatprep.subr.mxu0 0.0
    %147 = vmatpush2.msra.mxu0 0.0
    %148 = vmatprep.subr.mxu0 0.0
    %149 = vmatpush2.msra.mxu0 0.0
    %150 = vmatprep.subr.mxu0 0.0
    %151 = vmatpush2.msra.mxu0 0.0
    %152 = vmatprep.subr.mxu0 0.0
    %153 = vmatpush2.msra.mxu0 0.0
    %154 = vmatprep.subr.mxu0 0.0
    %155 = vmatpush2.msra.mxu0 0.0
    %156 = vmatprep.subr.mxu0 0.0
    %157 = vmatpush2.msra.mxu0 0.0
    %158 = vmatprep.subr.mxu0 0.0
    %159 = vmatpush2.msra.mxu0 0.0
    %160 = vmatprep.subr.mxu0 0.0
    %161 = vmatpush2.msra.mxu0 0.0
    %162 = vmatprep.subr.mxu0 0.0
    %163 = vmatpush2.msra.mxu0 0.0
    %164 = vmatprep.subr.mxu0 0.0
    %165 = vmatpush2.msra.mxu0 0.0
    %166 = vmatprep.mubr.f32.mxu0 0.0
    %167 = vmatmul.mubr.f32.gmra.mxu0 %v100
    %v168 = vpop.f32.mrf.mxu0
    %v169 = vadd.f32 0.0, %v168
    %v170 = vpop.f32.mrf.mxu0
    %171 = vdwg.mxu0
    %v172 = vmul.f32 %v169, %v169
    %vm173 = vcmask 97280
    %v174 = vsel %vm173, %v172, 0.0
    %175 = vadd.xlane.f32.xlu0 %v174
    %v176 = vpop.xlane.xlu0 %175
    %v177 = vmul.f32 %v169, %v176
    %v178 = vld [vmem:[#allocation7] sm:$0xff]
    %v179 = vld [vmem:[#allocation7 + $0x8] sm:$0xff]
    %v180 = vld [vmem:[#allocation7 + $0x10] sm:$0xff]
    %v181 = vld [vmem:[#allocation7 + $0x18] sm:$0xff]
    %v182 = vld [vmem:[#allocation7 + $0x20] sm:$0x7]
    %v183 = vld [vmem:[#allocation7 + $0x28] sm:$0x7]
    %v184 = vld [vmem:[#allocation7 + $0x30] sm:$0x7]
    %v185 = vld [vmem:[#allocation7 + $0x38] sm:$0x7]
    %v186 = vld [vmem:[#allocation2] sm:$0xff]
    %v187 = vld [vmem:[#allocation2 + $0x8] sm:$0xff]
    %v188 = vld [vmem:[#allocation2 + $0x10] sm:$0xff]
    %v189 = vld [vmem:[#allocation2 + $0x18] sm:$0xff]
    %v190 = vld [vmem:[#allocation2 + $0x20] sm:$0xf]
    %v191 = vld [vmem:[#allocation2 + $0x28] sm:$0xf]
    %v192 = vld [vmem:[#allocation2 + $0x30] sm:$0xf]
    %v193 = vld [vmem:[#allocation2 + $0x38] sm:$0xf]
    %v194 = vlaneseq
    %v195 = vshrl.u32 %v194, 7
    %v196 = vsub.s32 0, %v195
    %v197 = vrot.slane %v178, %v196
    %v198 = vlaneseq
    %v199 = vshrl.u32 %v198, 7
    %v200 = vsub.s32 0, %v199
    %v201 = vrot.slane %v179, %v200
    %v202 = vlaneseq
    %v203 = vshrl.u32 %v202, 7
    %v204 = vsub.s32 0, %v203
    %v205 = vrot.slane %v180, %v204
    %v206 = vlaneseq
    %v207 = vshrl.u32 %v206, 7
    %v208 = vsub.s32 0, %v207
    %v209 = vrot.slane %v181, %v208
    %v211 = vsel %vm173, %v177, 0
    %vm213 = vcmask 1043456
    %v215 = vsel %vm213, %v190, 0
    %v218 = vsel %vm213, %v191, 0
    %v221 = vsel %vm213, %v192, 0
    %v224 = vsel %vm213, %v193, 0
    %226 = vmatprep.subr.mxu0 0.0
    %227 = vmatpush1.msra.mxu0 0.0
    %228 = vmatprep.subr.mxu0 0.0
    %229 = vmatpush1.msra.mxu0 0.0
    %230 = vmatprep.subr.mxu0 0.0
    %231 = vmatpush1.msra.mxu0 0.0
    %232 = vmatprep.subr.mxu0 0.0
    %233 = vmatpush1.msra.mxu0 0.0
    %234 = vmatprep.subr.mxu0 0.0
    %235 = vmatpush1.msra.mxu0 0.0
    %236 = vmatprep.subr.mxu0 0.0
    %237 = vmatpush1.msra.mxu0 0.0
    %238 = vmatprep.subr.mxu0 0.0
    %239 = vmatpush1.msra.mxu0 0.0
    %240 = vmatprep.subr.mxu0 0.0
    %241 = vmatpush1.msra.mxu0 0.0
    %242 = vmatprep.subr.mxu0 0.0
    %243 = vmatpush1.msra.mxu0 0.0
    %244 = vmatprep.subr.mxu0 0.0
    %245 = vmatpush1.msra.mxu0 0.0
    %246 = vmatprep.subr.mxu0 0.0
    %247 = vmatpush1.msra.mxu0 0.0
    %248 = vmatprep.subr.mxu0 0.0
    %249 = vmatpush1.msra.mxu0 0.0
    %250 = vmatprep.subr.mxu0 0.0
    %251 = vmatpush1.msra.mxu0 0.0
    %252 = vmatprep.subr.mxu0 0.0
    %253 = vmatpush1.msra.mxu0 0.0
    %254 = vmatprep.subr.mxu0 %v218
    %255 = vmatpush1.msra.mxu0 %v215
    %256 = vmatprep.subr.mxu0 %v187
    %257 = vmatpush1.msra.mxu0 %v186
    %258 = vmatprep.subr.mxu0 0.0
    %259 = vmatpush2.msra.mxu0 0.0
    %260 = vmatprep.subr.mxu0 0.0
    %261 = vmatpush2.msra.mxu0 0.0
    %262 = vmatprep.subr.mxu0 0.0
    %263 = vmatpush2.msra.mxu0 0.0
    %264 = vmatprep.subr.mxu0 0.0
    %265 = vmatpush2.msra.mxu0 0.0
    %266 = vmatprep.subr.mxu0 0.0
    %267 = vmatpush2.msra.mxu0 0.0
    %268 = vmatprep.subr.mxu0 0.0
    %269 = vmatpush2.msra.mxu0 0.0
    %270 = vmatprep.subr.mxu0 0.0
    %271 = vmatpush2.msra.mxu0 0.0
    %272 = vmatprep.subr.mxu0 0.0
    %273 = vmatpush2.msra.mxu0 0.0
    %274 = vmatprep.subr.mxu0 0.0
    %275 = vmatpush2.msra.mxu0 0.0
    %276 = vmatprep.subr.mxu0 0.0
    %277 = vmatpush2.msra.mxu0 0.0
    %278 = vmatprep.subr.mxu0 0.0
    %279 = vmatpush2.msra.mxu0 0.0
    %280 = vmatprep.subr.mxu0 0.0
    %281 = vmatpush2.msra.mxu0 0.0
    %282 = vmatprep.subr.mxu0 0.0
    %283 = vmatpush2.msra.mxu0 0.0
    %284 = vmatprep.subr.mxu0 0.0
    %285 = vmatpush2.msra.mxu0 0.0
    %286 = vmatprep.subr.mxu0 0.0
    %287 = vmatpush2.msra.mxu0 0.0
    %288 = vmatprep.subr.mxu0 0.0
    %289 = vmatpush2.msra.mxu0 0.0
    %290 = vmatprep.mubr.f32.mxu0 0.0
    %291 = vmatmul.mubr.f32.gmra.mxu0 %v211
    %v292 = vpop.f32.mrf.mxu0
    %v293 = vadd.f32 %v197, %v292
    %v294 = vpop.f32.mrf.mxu0
    %v295 = vadd.f32 %v201, %v294
    %296 = vdwg.mxu0
    %297 = vmatprep.subr.mxu0 0.0
    %298 = vmatpush1.msra.mxu0 0.0
    %299 = vmatprep.subr.mxu0 0.0
    %300 = vmatpush1.msra.mxu0 0.0
    %301 = vmatprep.subr.mxu0 0.0
    %302 = vmatpush1.msra.mxu0 0.0
    %303 = vmatprep.subr.mxu0 0.0
    %304 = vmatpush1.msra.mxu0 0.0
    %305 = vmatprep.subr.mxu0 0.0
    %306 = vmatpush1.msra.mxu0 0.0
    %307 = vmatprep.subr.mxu0 0.0
    %308 = vmatpush1.msra.mxu0 0.0
    %309 = vmatprep.subr.mxu0 0.0
    %310 = vmatpush1.msra.mxu0 0.0
    %311 = vmatprep.subr.mxu0 0.0
    %312 = vmatpush1.msra.mxu0 0.0
    %313 = vmatprep.subr.mxu0 0.0
    %314 = vmatpush1.msra.mxu0 0.0
    %315 = vmatprep.subr.mxu0 0.0
    %316 = vmatpush1.msra.mxu0 0.0
    %317 = vmatprep.subr.mxu0 0.0
    %318 = vmatpush1.msra.mxu0 0.0
    %319 = vmatprep.subr.mxu0 0.0
    %320 = vmatpush1.msra.mxu0 0.0
    %321 = vmatprep.subr.mxu0 0.0
    %322 = vmatpush1.msra.mxu0 0.0
    %323 = vmatprep.subr.mxu0 0.0
    %324 = vmatpush1.msra.mxu0 0.0
    %325 = vmatprep.subr.mxu0 %v224
    %326 = vmatpush1.msra.mxu0 %v221
    %327 = vmatprep.subr.mxu0 %v189
    %328 = vmatpush1.msra.mxu0 %v188
    %329 = vmatprep.subr.mxu0 0.0
    %330 = vmatpush2.msra.mxu0 0.0
    %331 = vmatprep.subr.mxu0 0.0
    %332 = vmatpush2.msra.mxu0 0.0
    %333 = vmatprep.subr.mxu0 0.0
    %334 = vmatpush2.msra.mxu0 0.0
    %335 = vmatprep.subr.mxu0 0.0
    %336 = vmatpush2.msra.mxu0 0.0
    %337 = vmatprep.subr.mxu0 0.0
    %338 = vmatpush2.msra.mxu0 0.0
    %339 = vmatprep.subr.mxu0 0.0
    %340 = vmatpush2.msra.mxu0 0.0
    %341 = vmatprep.subr.mxu0 0.0
    %342 = vmatpush2.msra.mxu0 0.0
    %343 = vmatprep.subr.mxu0 0.0
    %344 = vmatpush2.msra.mxu0 0.0
    %345 = vmatprep.subr.mxu0 0.0
    %346 = vmatpush2.msra.mxu0 0.0
    %347 = vmatprep.subr.mxu0 0.0
    %348 = vmatpush2.msra.mxu0 0.0
    %349 = vmatprep.subr.mxu0 0.0
    %350 = vmatpush2.msra.mxu0 0.0
    %351 = vmatprep.subr.mxu0 0.0
    %352 = vmatpush2.msra.mxu0 0.0
    %353 = vmatprep.subr.mxu0 0.0
    %354 = vmatpush2.msra.mxu0 0.0
    %355 = vmatprep.subr.mxu0 0.0
    %356 = vmatpush2.msra.mxu0 0.0
    %357 = vmatprep.subr.mxu0 0.0
    %358 = vmatpush2.msra.mxu0 0.0
    %359 = vmatprep.subr.mxu0 0.0
    %360 = vmatpush2.msra.mxu0 0.0
    %361 = vmatprep.mubr.f32.mxu0 0.0
    %362 = vmatmul.mubr.f32.gmra.mxu0 %v211
    %v363 = vpop.f32.mrf.mxu0
    %v364 = vadd.f32 %v205, %v363
    %v365 = vpop.f32.mrf.mxu0
    %v366 = vadd.f32 %v209, %v365
    %367 = vdwg.mxu0
    %v368 = vrot.slane %v293, 4
    %v369 = vadd.f32 %v293, %v368
    %v370 = vrot.slane %v369, 2
    %v371 = vadd.f32 %v369, %v370
    %v372 = vrot.slane %v371, 1
    %v373 = vadd.f32 %v371, %v372
    %v374 = vrot.slane %v295, 4
    %v375 = vadd.f32 %v295, %v374
    %v376 = vrot.slane %v375, 2
    %v377 = vadd.f32 %v375, %v376
    %v378 = vrot.slane %v377, 1
    %v379 = vadd.f32 %v377, %v378
    %v380 = vrot.slane %v364, 4
    %v381 = vadd.f32 %v364, %v380
    %v382 = vrot.slane %v381, 2
    %v383 = vadd.f32 %v381, %v382
    %v384 = vrot.slane %v383, 1
    %v385 = vadd.f32 %v383, %v384
    %v386 = vrot.slane %v366, 4
    %v387 = vadd.f32 %v366, %v386
    %v388 = vrot.slane %v387, 2
    %v389 = vadd.f32 %v387, %v388
    %v390 = vrot.slane %v389, 1
    %v391 = vadd.f32 %v389, %v390
    %v392 = vrcp.pop 8.0
    %v393 = vmul.f32 %v373, %v392
    %v394 = vmul.f32 %v379, %v392
    %v395 = vmul.f32 %v385, %v392
    %v396 = vmul.f32 %v391, %v392
    %v397 = vmul.f32 %v293, %v293
    %v398 = vmul.f32 %v295, %v295
    %v399 = vmul.f32 %v364, %v364
    %v400 = vmul.f32 %v366, %v366
    %v401 = vrot.slane %v397, 4
    %v402 = vadd.f32 %v397, %v401
    %v403 = vrot.slane %v402, 2
    %v404 = vadd.f32 %v402, %v403
    %v405 = vrot.slane %v404, 1
    %v406 = vadd.f32 %v404, %v405
    %v407 = vrot.slane %v398, 4
    %v408 = vadd.f32 %v398, %v407
    %v409 = vrot.slane %v408, 2
    %v410 = vadd.f32 %v408, %v409
    %v411 = vrot.slane %v410, 1
    %v412 = vadd.f32 %v410, %v411
    %v413 = vrot.slane %v399, 4
    %v414 = vadd.f32 %v399, %v413
    %v415 = vrot.slane %v414, 2
    %v416 = vadd.f32 %v414, %v415
    %v417 = vrot.slane %v416, 1
    %v418 = vadd.f32 %v416, %v417
    %v419 = vrot.slane %v400, 4
    %v420 = vadd.f32 %v400, %v419
    %v421 = vrot.slane %v420, 2
    %v422 = vadd.f32 %v420, %v421
    %v423 = vrot.slane %v422, 1
    %v424 = vadd.f32 %v422, %v423
    %v425 = vmul.f32 %v406, %v392
    %v426 = vmul.f32 %v412, %v392
    %v427 = vmul.f32 %v418, %v392
    %v428 = vmul.f32 %v424, %v392
    %v429 = vmul.f32 %v393, %v393
    %v430 = vmul.f32 %v394, %v394
    %v431 = vmul.f32 %v395, %v395
    %v432 = vmul.f32 %v396, %v396
    %v433 = vsub.f32 %v425, %v429
    %v434 = vsub.f32 %v426, %v430
    %v435 = vsub.f32 %v427, %v431
    %v436 = vsub.f32 %v428, %v432
    %v437 = vadd.f32 %v433, 1e-05
    %v438 = vadd.f32 %v434, 1e-05
    %v439 = vadd.f32 %v435, 1e-05
    %v440 = vadd.f32 %v436, 1e-05
    %v441 = vrsqrt.pop %v437
    %v442 = vrsqrt.pop %v438
    %v443 = vrsqrt.pop %v439
    %v444 = vrsqrt.pop %v440
    %v445 = vmul.f32 %v178, %v441
    %v446 = vmul.f32 %v179, %v442
    %v447 = vmul.f32 %v180, %v443
    %v448 = vmul.f32 %v181, %v444
    %v449 = vmul.f32 %v393, %v445
    %v450 = vmul.f32 %v394, %v446
    %v451 = vmul.f32 %v395, %v447
    %v452 = vmul.f32 %v396, %v448
    %v457 = vrot.slane %v449, 7
    %v458 = vrot.slane %v450, 7
    %v459 = vrot.slane %v451, 7
    %v460 = vrot.slane %v452, 7
    %v465 = vsub.f32 %v178, %v457
    %v466 = vsub.f32 %v179, %v458
    %v467 = vsub.f32 %v180, %v459
    %v468 = vsub.f32 %v181, %v460
    %v469 = vlaneseq
    %v470 = vshrl.u32 %v469, 7
    %v471 = vsub.s32 1, %v470
    %v472 = vrot.slane %v445, %v471
    %v473 = vlaneseq
    %v474 = vshrl.u32 %v473, 7
    %v475 = vsub.s32 1, %v474
    %v476 = vrot.slane %v446, %v475
    %v477 = vlaneseq
    %v478 = vshrl.u32 %v477, 7
    %v479 = vsub.s32 1, %v478
    %v480 = vrot.slane %v447, %v479
    %v481 = vlaneseq
    %v482 = vshrl.u32 %v481, 7
    %v483 = vsub.s32 1, %v482
    %v484 = vrot.slane %v448, %v483
    %v485 = vmul.f32 %v293, %v472
    %v486 = vmul.f32 %v295, %v476
    %v487 = vmul.f32 %v364, %v480
    %v488 = vmul.f32 %v366, %v484
    %v489 = vlaneseq
    %v490 = vshrl.u32 %v489, 7
    %v491 = vsub.s32 2, %v490
    %v492 = vrot.slane %v465, %v491
    %v493 = vlaneseq
    %v494 = vshrl.u32 %v493, 7
    %v495 = vsub.s32 2, %v494
    %v496 = vrot.slane %v466, %v495
    %v497 = vlaneseq
    %v498 = vshrl.u32 %v497, 7
    %v499 = vsub.s32 2, %v498
    %v500 = vrot.slane %v467, %v499
    %v501 = vlaneseq
    %v502 = vshrl.u32 %v501, 7
    %v503 = vsub.s32 2, %v502
    %v504 = vrot.slane %v468, %v503
    %v505 = vadd.f32 %v485, %v492
    %v506 = vadd.f32 %v486, %v496
    %v507 = vadd.f32 %v487, %v500
    %v508 = vadd.f32 %v488, %v504
    %v509 = vtanh.pop %v505
    %v510 = vtanh.pop %v506
    %v511 = vtanh.pop %v507
    %v512 = vtanh.pop %v508
    %v513 = vld [vmem:[#allocation4] sm:$0xff]
    %v514 = vld [vmem:[#allocation4 + $0x8] sm:$0xff]
    %v515 = vld [vmem:[#allocation4 + $0x10] sm:$0xff]
    %v516 = vld [vmem:[#allocation4 + $0x18] sm:$0xff]
    %v517 = vld [vmem:[#allocation4 + $0x20] sm:$0xff]
    %v518 = vld [vmem:[#allocation4 + $0x28] sm:$0xff]
    %v519 = vld [vmem:[#allocation4 + $0x30] sm:$0xff]
    %v520 = vld [vmem:[#allocation4 + $0x38] sm:$0xff]
    %v521 = vld [vmem:[#allocation4 + $0x40] sm:$0xff]
    %v522 = vld [vmem:[#allocation4 + $0x48] sm:$0xff]
    %v523 = vld [vmem:[#allocation4 + $0x50] sm:$0xff]
    %v524 = vld [vmem:[#allocation4 + $0x58] sm:$0xff]
    %v525 = vld [vmem:[#allocation4 + $0x60] sm:$0xff]
    %v526 = vld [vmem:[#allocation4 + $0x68] sm:$0xff]
    %v527 = vld [vmem:[#allocation4 + $0x70] sm:$0xff]
    %v528 = vld [vmem:[#allocation4 + $0x78] sm:$0xff]
    %v529 = vld [vmem:[#allocation4 + $0x80] sm:$0xff]
    %v530 = vld [vmem:[#allocation4 + $0x88] sm:$0xff]
    %v531 = vld [vmem:[#allocation4 + $0x90] sm:$0xff]
    %v532 = vld [vmem:[#allocation4 + $0x98] sm:$0xff]
    %v533 = vld [vmem:[#allocation4 + $0xa0] sm:$0xff]
    %v534 = vld [vmem:[#allocation4 + $0xa8] sm:$0xff]
    %v535 = vld [vmem:[#allocation4 + $0xb0] sm:$0xff]
    %v536 = vld [vmem:[#allocation4 + $0xb8] sm:$0xff]
    %v537 = vld [vmem:[#allocation4 + $0xc0] sm:$0xff]
    %v538 = vld [vmem:[#allocation4 + $0xc8] sm:$0xff]
    %v539 = vld [vmem:[#allocation4 + $0xd0] sm:$0xff]
    %v540 = vld [vmem:[#allocation4 + $0xd8] sm:$0xff]
    %v541 = vld [vmem:[#allocation4 + $0xe0] sm:$0xff]
    %v542 = vld [vmem:[#allocation4 + $0xe8] sm:$0xff]
    %v543 = vld [vmem:[#allocation4 + $0xf0] sm:$0xff]
    %v544 = vld [vmem:[#allocation4 + $0xf8] sm:$0xff]
    %v545 = vld [vmem:[#allocation4 + $0x100] sm:$0xff]
    %v546 = vld [vmem:[#allocation4 + $0x108] sm:$0xff]
    %v547 = vld [vmem:[#allocation4 + $0x110] sm:$0xff]
    %v548 = vld [vmem:[#allocation4 + $0x118] sm:$0xff]
    %v549 = vld [vmem:[#allocation4 + $0x120] sm:$0xff]
    %v550 = vld [vmem:[#allocation4 + $0x128] sm:$0xff]
    %v551 = vld [vmem:[#allocation4 + $0x130] sm:$0xff]
    %v552 = vld [vmem:[#allocation4 + $0x138] sm:$0xff]
    %v553 = vld [vmem:[#allocation4 + $0x140] sm:$0xff]
    %v554 = vld [vmem:[#allocation4 + $0x148] sm:$0xff]
    %v555 = vld [vmem:[#allocation4 + $0x150] sm:$0xff]
    %v556 = vld [vmem:[#allocation4 + $0x158] sm:$0xff]
    %v557 = vld [vmem:[#allocation4 + $0x160] sm:$0xff]
    %v558 = vld [vmem:[#allocation4 + $0x168] sm:$0xff]
    %v559 = vld [vmem:[#allocation4 + $0x170] sm:$0xff]
    %v560 = vld [vmem:[#allocation4 + $0x178] sm:$0xff]
    %v561 = vld [vmem:[#allocation4 + $0x180] sm:$0xff]
    %v562 = vld [vmem:[#allocation4 + $0x188] sm:$0xff]
    %v563 = vld [vmem:[#allocation4 + $0x190] sm:$0xff]
    %v564 = vld [vmem:[#allocation4 + $0x198] sm:$0xff]
    %v565 = vld [vmem:[#allocation4 + $0x1a0] sm:$0xff]
    %v566 = vld [vmem:[#allocation4 + $0x1a8] sm:$0xff]
    %v567 = vld [vmem:[#allocation4 + $0x1b0] sm:$0xff]
    %v568 = vld [vmem:[#allocation4 + $0x1b8] sm:$0xff]
    %v569 = vld [vmem:[#allocation4 + $0x1c0] sm:$0xff]
    %v570 = vld [vmem:[#allocation4 + $0x1c8] sm:$0xff]
    %v571 = vld [vmem:[#allocation4 + $0x1d0] sm:$0xff]
    %v572 = vld [vmem:[#allocation4 + $0x1d8] sm:$0xff]
    %v573 = vld [vmem:[#allocation4 + $0x1e0] sm:$0xff]
    %v574 = vld [vmem:[#allocation4 + $0x1e8] sm:$0xff]
    %v575 = vld [vmem:[#allocation4 + $0x1f0] sm:$0xff]
    %v576 = vld [vmem:[#allocation4 + $0x1f8] sm:$0xff]
    %v577 = vld [vmem:[#allocation4 + $0x200] sm:$0xff]
    %v578 = vld [vmem:[#allocation4 + $0x208] sm:$0xff]
    %v579 = vld [vmem:[#allocation4 + $0x210] sm:$0xff]
    %v580 = vld [vmem:[#allocation4 + $0x218] sm:$0xff]
    %v581 = vld [vmem:[#allocation4 + $0x220] sm:$0xff]
    %v582 = vld [vmem:[#allocation4 + $0x228] sm:$0xff]
    %v583 = vld [vmem:[#allocation4 + $0x230] sm:$0xff]
    %v584 = vld [vmem:[#allocation4 + $0x238] sm:$0xff]
    %v585 = vld [vmem:[#allocation4 + $0x240] sm:$0xff]
    %v586 = vld [vmem:[#allocation4 + $0x248] sm:$0xff]
    %v587 = vld [vmem:[#allocation4 + $0x250] sm:$0xff]
    %v588 = vld [vmem:[#allocation4 + $0x258] sm:$0xff]
    %v589 = vld [vmem:[#allocation4 + $0x260] sm:$0xff]
    %v590 = vld [vmem:[#allocation4 + $0x268] sm:$0xff]
    %v591 = vld [vmem:[#allocation4 + $0x270] sm:$0xff]
    %v592 = vld [vmem:[#allocation4 + $0x278] sm:$0xff]
    %v593 = vld [vmem:[#allocation4 + $0x280] sm:$0xff]
    %v594 = vld [vmem:[#allocation4 + $0x288] sm:$0xff]
    %v595 = vld [vmem:[#allocation4 + $0x290] sm:$0xff]
    %v596 = vld [vmem:[#allocation4 + $0x298] sm:$0xff]
    %v597 = vld [vmem:[#allocation4 + $0x2a0] sm:$0xff]
    %v598 = vld [vmem:[#allocation4 + $0x2a8] sm:$0xff]
    %v599 = vld [vmem:[#allocation4 + $0x2b0] sm:$0xff]
    %v600 = vld [vmem:[#allocation4 + $0x2b8] sm:$0xff]
    %v601 = vld [vmem:[#allocation4 + $0x2c0] sm:$0xff]
    %v602 = vld [vmem:[#allocation4 + $0x2c8] sm:$0xff]
    %v603 = vld [vmem:[#allocation4 + $0x2d0] sm:$0xff]
    %v604 = vld [vmem:[#allocation4 + $0x2d8] sm:$0xff]
    %v605 = vld [vmem:[#allocation4 + $0x2e0] sm:$0xff]
    %v606 = vld [vmem:[#allocation4 + $0x2e8] sm:$0xff]
    %v607 = vld [vmem:[#allocation4 + $0x2f0] sm:$0xff]
    %v608 = vld [vmem:[#allocation4 + $0x2f8] sm:$0xff]
    %v609 = vld [vmem:[#allocation4 + $0x300] sm:$0xff]
    %v610 = vld [vmem:[#allocation4 + $0x308] sm:$0xff]
    %v611 = vld [vmem:[#allocation4 + $0x310] sm:$0xff]
    %v612 = vld [vmem:[#allocation4 + $0x318] sm:$0xff]
    %v613 = vld [vmem:[#allocation4 + $0x320] sm:$0xff]
    %v614 = vld [vmem:[#allocation4 + $0x328] sm:$0xff]
    %v615 = vld [vmem:[#allocation4 + $0x330] sm:$0xff]
    %v616 = vld [vmem:[#allocation4 + $0x338] sm:$0xff]
    %v617 = vld [vmem:[#allocation4 + $0x340] sm:$0xff]
    %v618 = vld [vmem:[#allocation4 + $0x348] sm:$0xff]
    %v619 = vld [vmem:[#allocation4 + $0x350] sm:$0xff]
    %v620 = vld [vmem:[#allocation4 + $0x358] sm:$0xff]
    %v621 = vld [vmem:[#allocation4 + $0x360] sm:$0xff]
    %v622 = vld [vmem:[#allocation4 + $0x368] sm:$0xff]
    %v623 = vld [vmem:[#allocation4 + $0x370] sm:$0xff]
    %v624 = vld [vmem:[#allocation4 + $0x378] sm:$0xff]
    %v625 = vld [vmem:[#allocation4 + $0x380] sm:$0xff]
    %v626 = vld [vmem:[#allocation4 + $0x388] sm:$0xff]
    %v627 = vld [vmem:[#allocation4 + $0x390] sm:$0xff]
    %v628 = vld [vmem:[#allocation4 + $0x398] sm:$0xff]
    %v629 = vld [vmem:[#allocation4 + $0x3a0] sm:$0xff]
    %v630 = vld [vmem:[#allocation4 + $0x3a8] sm:$0xff]
    %v631 = vld [vmem:[#allocation4 + $0x3b0] sm:$0xff]
    %v632 = vld [vmem:[#allocation4 + $0x3b8] sm:$0xff]
    %v633 = vld [vmem:[#allocation4 + $0x3c0] sm:$0xff]
    %v634 = vld [vmem:[#allocation4 + $0x3c8] sm:$0xff]
    %v635 = vld [vmem:[#allocation4 + $0x3d0] sm:$0xff]
    %v636 = vld [vmem:[#allocation4 + $0x3d8] sm:$0xff]
    %v637 = vld [vmem:[#allocation4 + $0x3e0] sm:$0xff]
    %v638 = vld [vmem:[#allocation4 + $0x3e8] sm:$0xff]
    %v639 = vld [vmem:[#allocation4 + $0x3f0] sm:$0xff]
    %v640 = vld [vmem:[#allocation4 + $0x3f8] sm:$0xff]
    %v641 = vld [vmem:[#allocation4 + $0x400] sm:$0xff]
    %v642 = vld [vmem:[#allocation4 + $0x408] sm:$0xff]
    %v643 = vld [vmem:[#allocation4 + $0x410] sm:$0xff]
    %v644 = vld [vmem:[#allocation4 + $0x418] sm:$0xff]
    %v645 = vld [vmem:[#allocation4 + $0x420] sm:$0xff]
    %v646 = vld [vmem:[#allocation4 + $0x428] sm:$0xff]
    %v647 = vld [vmem:[#allocation4 + $0x430] sm:$0xff]
    %v648 = vld [vmem:[#allocation4 + $0x438] sm:$0xff]
    %v649 = vld [vmem:[#allocation4 + $0x440] sm:$0xff]
    %v650 = vld [vmem:[#allocation4 + $0x448] sm:$0xff]
    %v651 = vld [vmem:[#allocation4 + $0x450] sm:$0xff]
    %v652 = vld [vmem:[#allocation4 + $0x458] sm:$0xff]
    %v653 = vld [vmem:[#allocation4 + $0x460] sm:$0xff]
    %v654 = vld [vmem:[#allocation4 + $0x468] sm:$0xff]
    %v655 = vld [vmem:[#allocation4 + $0x470] sm:$0xff]
    %v656 = vld [vmem:[#allocation4 + $0x478] sm:$0xff]
    %v657 = vld [vmem:[#allocation4 + $0x480] sm:$0xff]
    %v658 = vld [vmem:[#allocation4 + $0x488] sm:$0xff]
    %v659 = vld [vmem:[#allocation4 + $0x490] sm:$0xff]
    %v660 = vld [vmem:[#allocation4 + $0x498] sm:$0xff]
    %v661 = vld [vmem:[#allocation4 + $0x4a0] sm:$0xff]
    %v662 = vld [vmem:[#allocation4 + $0x4a8] sm:$0xff]
    %v663 = vld [vmem:[#allocation4 + $0x4b0] sm:$0xff]
    %v664 = vld [vmem:[#allocation4 + $0x4b8] sm:$0xff]
    %v665 = vld [vmem:[#allocation4 + $0x4c0] sm:$0xff]
    %v666 = vld [vmem:[#allocation4 + $0x4c8] sm:$0xff]
    %v667 = vld [vmem:[#allocation4 + $0x4d0] sm:$0xff]
    %v668 = vld [vmem:[#allocation4 + $0x4d8] sm:$0xff]
    %v669 = vld [vmem:[#allocation4 + $0x4e0] sm:$0xff]
    %v670 = vld [vmem:[#allocation4 + $0x4e8] sm:$0xff]
    %v671 = vld [vmem:[#allocation4 + $0x4f0] sm:$0xff]
    %v672 = vld [vmem:[#allocation4 + $0x4f8] sm:$0xff]
    %v673 = vld [vmem:[#allocation4 + $0x500] sm:$0xff]
    %v674 = vld [vmem:[#allocation4 + $0x508] sm:$0xff]
    %v675 = vld [vmem:[#allocation4 + $0x510] sm:$0xff]
    %v676 = vld [vmem:[#allocation4 + $0x518] sm:$0xff]
    %v677 = vld [vmem:[#allocation4 + $0x520] sm:$0xff]
    %v678 = vld [vmem:[#allocation4 + $0x528] sm:$0xff]
    %v679 = vld [vmem:[#allocation4 + $0x530] sm:$0xff]
    %v680 = vld [vmem:[#allocation4 + $0x538] sm:$0xff]
    %v681 = vld [vmem:[#allocation4 + $0x540] sm:$0xff]
    %v682 = vld [vmem:[#allocation4 + $0x548] sm:$0xff]
    %v683 = vld [vmem:[#allocation4 + $0x550] sm:$0xff]
    %v684 = vld [vmem:[#allocation4 + $0x558] sm:$0xff]
    %v685 = vld [vmem:[#allocation4 + $0x560] sm:$0xff]
    %v686 = vld [vmem:[#allocation4 + $0x568] sm:$0xff]
    %v687 = vld [vmem:[#allocation4 + $0x570] sm:$0xff]
    %v688 = vld [vmem:[#allocation4 + $0x578] sm:$0xff]
    %v689 = vld [vmem:[#allocation4 + $0x580] sm:$0xff]
    %v690 = vld [vmem:[#allocation4 + $0x588] sm:$0xff]
    %v691 = vld [vmem:[#allocation4 + $0x590] sm:$0xff]
    %v692 = vld [vmem:[#allocation4 + $0x598] sm:$0xff]
    %v693 = vld [vmem:[#allocation4 + $0x5a0] sm:$0xff]
    %v694 = vld [vmem:[#allocation4 + $0x5a8] sm:$0xff]
    %v695 = vld [vmem:[#allocation4 + $0x5b0] sm:$0xff]
    %v696 = vld [vmem:[#allocation4 + $0x5b8] sm:$0xff]
    %v697 = vld [vmem:[#allocation4 + $0x5c0] sm:$0xff]
    %v698 = vld [vmem:[#allocation4 + $0x5c8] sm:$0xff]
    %v699 = vld [vmem:[#allocation4 + $0x5d0] sm:$0xff]
    %v700 = vld [vmem:[#allocation4 + $0x5d8] sm:$0xff]
    %v701 = vld [vmem:[#allocation4 + $0x5e0] sm:$0xff]
    %v702 = vld [vmem:[#allocation4 + $0x5e8] sm:$0xff]
    %v703 = vld [vmem:[#allocation4 + $0x5f0] sm:$0xff]
    %v704 = vld [vmem:[#allocation4 + $0x5f8] sm:$0xff]
    %v705 = vld [vmem:[#allocation4 + $0x600] sm:$0xff]
    %v706 = vld [vmem:[#allocation4 + $0x608] sm:$0xff]
    %v707 = vld [vmem:[#allocation4 + $0x610] sm:$0xff]
    %v708 = vld [vmem:[#allocation4 + $0x618] sm:$0xff]
    %v709 = vld [vmem:[#allocation4 + $0x620] sm:$0xff]
    %v710 = vld [vmem:[#allocation4 + $0x628] sm:$0xff]
    %v711 = vld [vmem:[#allocation4 + $0x630] sm:$0xff]
    %v712 = vld [vmem:[#allocation4 + $0x638] sm:$0xff]
    %v713 = vld [vmem:[#allocation4 + $0x640] sm:$0xff]
    %v714 = vld [vmem:[#allocation4 + $0x648] sm:$0xff]
    %v715 = vld [vmem:[#allocation4 + $0x650] sm:$0xff]
    %v716 = vld [vmem:[#allocation4 + $0x658] sm:$0xff]
    %v717 = vld [vmem:[#allocation4 + $0x660] sm:$0xff]
    %v718 = vld [vmem:[#allocation4 + $0x668] sm:$0xff]
    %v719 = vld [vmem:[#allocation4 + $0x670] sm:$0xff]
    %v720 = vld [vmem:[#allocation4 + $0x678] sm:$0xff]
    %v721 = vld [vmem:[#allocation4 + $0x680] sm:$0xff]
    %v722 = vld [vmem:[#allocation4 + $0x688] sm:$0xff]
    %v723 = vld [vmem:[#allocation4 + $0x690] sm:$0xff]
    %v724 = vld [vmem:[#allocation4 + $0x698] sm:$0xff]
    %v725 = vld [vmem:[#allocation4 + $0x6a0] sm:$0xff]
    %v726 = vld [vmem:[#allocation4 + $0x6a8] sm:$0xff]
    %v727 = vld [vmem:[#allocation4 + $0x6b0] sm:$0xff]
    %v728 = vld [vmem:[#allocation4 + $0x6b8] sm:$0xff]
    %v729 = vld [vmem:[#allocation4 + $0x6c0] sm:$0xff]
    %v730 = vld [vmem:[#allocation4 + $0x6c8] sm:$0xff]
    %v731 = vld [vmem:[#allocation4 + $0x6d0] sm:$0xff]
    %v732 = vld [vmem:[#allocation4 + $0x6d8] sm:$0xff]
    %v733 = vld [vmem:[#allocation4 + $0x6e0] sm:$0xff]
    %v734 = vld [vmem:[#allocation4 + $0x6e8] sm:$0xff]
    %v735 = vld [vmem:[#allocation4 + $0x6f0] sm:$0xff]
    %v736 = vld [vmem:[#allocation4 + $0x6f8] sm:$0xff]
    %v737 = vld [vmem:[#allocation4 + $0x700] sm:$0xff]
    %v738 = vld [vmem:[#allocation4 + $0x708] sm:$0xff]
    %v739 = vld [vmem:[#allocation4 + $0x710] sm:$0xff]
    %v740 = vld [vmem:[#allocation4 + $0x718] sm:$0xff]
    %v741 = vld [vmem:[#allocation4 + $0x720] sm:$0xff]
    %v742 = vld [vmem:[#allocation4 + $0x728] sm:$0xff]
    %v743 = vld [vmem:[#allocation4 + $0x730] sm:$0xff]
    %v744 = vld [vmem:[#allocation4 + $0x738] sm:$0xff]
    %v745 = vld [vmem:[#allocation4 + $0x740] sm:$0xff]
    %v746 = vld [vmem:[#allocation4 + $0x748] sm:$0xff]
    %v747 = vld [vmem:[#allocation4 + $0x750] sm:$0xff]
    %v748 = vld [vmem:[#allocation4 + $0x758] sm:$0xff]
    %v749 = vld [vmem:[#allocation4 + $0x760] sm:$0xff]
    %v750 = vld [vmem:[#allocation4 + $0x768] sm:$0xff]
    %v751 = vld [vmem:[#allocation4 + $0x770] sm:$0xff]
    %v752 = vld [vmem:[#allocation4 + $0x778] sm:$0xff]
    %v753 = vld [vmem:[#allocation4 + $0x780] sm:$0xff]
    %v754 = vld [vmem:[#allocation4 + $0x788] sm:$0xff]
    %v755 = vld [vmem:[#allocation4 + $0x790] sm:$0xff]
    %v756 = vld [vmem:[#allocation4 + $0x798] sm:$0xff]
    %v757 = vld [vmem:[#allocation4 + $0x7a0] sm:$0xff]
    %v758 = vld [vmem:[#allocation4 + $0x7a8] sm:$0xff]
    %v759 = vld [vmem:[#allocation4 + $0x7b0] sm:$0xff]
    %v760 = vld [vmem:[#allocation4 + $0x7b8] sm:$0xff]
    %v761 = vld [vmem:[#allocation4 + $0x7c0] sm:$0xff]
    %v762 = vld [vmem:[#allocation4 + $0x7c8] sm:$0xff]
    %v763 = vld [vmem:[#allocation4 + $0x7d0] sm:$0xff]
    %v764 = vld [vmem:[#allocation4 + $0x7d8] sm:$0xff]
    %v765 = vld [vmem:[#allocation4 + $0x7e0] sm:$0xff]
    %v766 = vld [vmem:[#allocation4 + $0x7e8] sm:$0xff]
    %v767 = vld [vmem:[#allocation4 + $0x7f0] sm:$0xff]
    %v768 = vld [vmem:[#allocation4 + $0x7f8] sm:$0xff]
    %v769 = vlaneseq
    %v770 = vshrl.u32 %v769, 7
    %v771 = vsub.s32 3, %v770
    %v772 = vrot.slane %v178, %v771
    %v773 = vlaneseq
    %v774 = vshrl.u32 %v773, 7
    %v775 = vsub.s32 3, %v774
    %v776 = vrot.slane %v179, %v775
    %v777 = vlaneseq
    %v778 = vshrl.u32 %v777, 7
    %v779 = vsub.s32 3, %v778
    %v780 = vrot.slane %v180, %v779
    %v781 = vlaneseq
    %v782 = vshrl.u32 %v781, 7
    %v783 = vsub.s32 3, %v782
    %v784 = vrot.slane %v181, %v783
    %785 = vmatprep.subr.mxu0 %v574
    %786 = vmatpush1.msra.mxu0 %v573
    %787 = vmatprep.subr.mxu0 %v570
    %788 = vmatpush1.msra.mxu0 %v569
    %789 = vmatprep.subr.mxu0 %v566
    %790 = vmatpush1.msra.mxu0 %v565
    %791 = vmatprep.subr.mxu0 %v562
    %792 = vmatpush1.msra.mxu0 %v561
    %793 = vmatprep.subr.mxu0 %v558
    %794 = vmatpush1.msra.mxu0 %v557
    %795 = vmatprep.subr.mxu0 %v554
    %796 = vmatpush1.msra.mxu0 %v553
    %797 = vmatprep.subr.mxu0 %v550
    %798 = vmatpush1.msra.mxu0 %v549
    %799 = vmatprep.subr.mxu0 %v546
    %800 = vmatpush1.msra.mxu0 %v545
    %801 = vmatprep.subr.mxu0 %v542
    %802 = vmatpush1.msra.mxu0 %v541
    %803 = vmatprep.subr.mxu0 %v538
    %804 = vmatpush1.msra.mxu0 %v537
    %805 = vmatprep.subr.mxu0 %v534
    %806 = vmatpush1.msra.mxu0 %v533
    %807 = vmatprep.subr.mxu0 %v530
    %808 = vmatpush1.msra.mxu0 %v529
    %809 = vmatprep.subr.mxu0 %v526
    %810 = vmatpush1.msra.mxu0 %v525
    %811 = vmatprep.subr.mxu0 %v522
    %812 = vmatpush1.msra.mxu0 %v521
    %813 = vmatprep.subr.mxu0 %v518
    %814 = vmatpush1.msra.mxu0 %v517
    %815 = vmatprep.subr.mxu0 %v514
    %816 = vmatpush1.msra.mxu0 %v513
    %817 = vmatprep.subr.mxu0 %v638
    %818 = vmatpush2.msra.mxu0 %v637
    %819 = vmatprep.subr.mxu0 %v634
    %820 = vmatpush2.msra.mxu0 %v633
    %821 = vmatprep.subr.mxu0 %v630
    %822 = vmatpush2.msra.mxu0 %v629
    %823 = vmatprep.subr.mxu0 %v626
    %824 = vmatpush2.msra.mxu0 %v625
    %825 = vmatprep.subr.mxu0 %v622
    %826 = vmatpush2.msra.mxu0 %v621
    %827 = vmatprep.subr.mxu0 %v618
    %828 = vmatpush2.msra.mxu0 %v617
    %829 = vmatprep.subr.mxu0 %v614
    %830 = vmatpush2.msra.mxu0 %v613
    %831 = vmatprep.subr.mxu0 %v610
    %832 = vmatpush2.msra.mxu0 %v609
    %833 = vmatprep.subr.mxu0 %v606
    %834 = vmatpush2.msra.mxu0 %v605
    %835 = vmatprep.subr.mxu0 %v602
    %836 = vmatpush2.msra.mxu0 %v601
    %837 = vmatprep.subr.mxu0 %v598
    %838 = vmatpush2.msra.mxu0 %v597
    %839 = vmatprep.subr.mxu0 %v594
    %840 = vmatpush2.msra.mxu0 %v593
    %841 = vmatprep.subr.mxu0 %v590
    %842 = vmatpush2.msra.mxu0 %v589
    %843 = vmatprep.subr.mxu0 %v586
    %844 = vmatpush2.msra.mxu0 %v585
    %845 = vmatprep.subr.mxu0 %v582
    %846 = vmatpush2.msra.mxu0 %v581
    %847 = vmatprep.subr.mxu0 %v578
    %848 = vmatpush2.msra.mxu0 %v577
    %849 = vmatprep.mubr.f32.mxu0 %v510
    %850 = vmatmul.mubr.f32.gmra.mxu0 %v509
    %v851 = vpop.f32.mrf.mxu0
    %v852 = vadd.f32 %v772, %v851
    %v853 = vpop.f32.mrf.mxu0
    %v854 = vadd.f32 %v776, %v853
    %855 = vdwg.mxu0
    %856 = vmatprep.subr.mxu0 %v702
    %857 = vmatpush1.msra.mxu0 %v701
    %858 = vmatprep.subr.mxu0 %v698
    %859 = vmatpush1.msra.mxu0 %v697
    %860 = vmatprep.subr.mxu0 %v694
    %861 = vmatpush1.msra.mxu0 %v693
    %862 = vmatprep.subr.mxu0 %v690
    %863 = vmatpush1.msra.mxu0 %v689
    %864 = vmatprep.subr.mxu0 %v686
    %865 = vmatpush1.msra.mxu0 %v685
    %866 = vmatprep.subr.mxu0 %v682
    %867 = vmatpush1.msra.mxu0 %v681
    %868 = vmatprep.subr.mxu0 %v678
    %869 = vmatpush1.msra.mxu0 %v677
    %870 = vmatprep.subr.mxu0 %v674
    %871 = vmatpush1.msra.mxu0 %v673
    %872 = vmatprep.subr.mxu0 %v670
    %873 = vmatpush1.msra.mxu0 %v669
    %874 = vmatprep.subr.mxu0 %v666
    %875 = vmatpush1.msra.mxu0 %v665
    %876 = vmatprep.subr.mxu0 %v662
    %877 = vmatpush1.msra.mxu0 %v661
    %878 = vmatprep.subr.mxu0 %v658
    %879 = vmatpush1.msra.mxu0 %v657
    %880 = vmatprep.subr.mxu0 %v654
    %881 = vmatpush1.msra.mxu0 %v653
    %882 = vmatprep.subr.mxu0 %v650
    %883 = vmatpush1.msra.mxu0 %v649
    %884 = vmatprep.subr.mxu0 %v646
    %885 = vmatpush1.msra.mxu0 %v645
    %886 = vmatprep.subr.mxu0 %v642
    %887 = vmatpush1.msra.mxu0 %v641
    %888 = vmatprep.subr.mxu0 %v766
    %889 = vmatpush2.msra.mxu0 %v765
    %890 = vmatprep.subr.mxu0 %v762
    %891 = vmatpush2.msra.mxu0 %v761
    %892 = vmatprep.subr.mxu0 %v758
    %893 = vmatpush2.msra.mxu0 %v757
    %894 = vmatprep.subr.mxu0 %v754
    %895 = vmatpush2.msra.mxu0 %v753
    %896 = vmatprep.subr.mxu0 %v750
    %897 = vmatpush2.msra.mxu0 %v749
    %898 = vmatprep.subr.mxu0 %v746
    %899 = vmatpush2.msra.mxu0 %v745
    %900 = vmatprep.subr.mxu0 %v742
    %901 = vmatpush2.msra.mxu0 %v741
    %902 = vmatprep.subr.mxu0 %v738
    %903 = vmatpush2.msra.mxu0 %v737
    %904 = vmatprep.subr.mxu0 %v734
    %905 = vmatpush2.msra.mxu0 %v733
    %906 = vmatprep.subr.mxu0 %v730
    %907 = vmatpush2.msra.mxu0 %v729
    %908 = vmatprep.subr.mxu0 %v726
    %909 = vmatpush2.msra.mxu0 %v725
    %910 = vmatprep.subr.mxu0 %v722
    %911 = vmatpush2.msra.mxu0 %v721
    %912 = vmatprep.subr.mxu0 %v718
    %913 = vmatpush2.msra.mxu0 %v717
    %914 = vmatprep.subr.mxu0 %v714
    %915 = vmatpush2.msra.mxu0 %v713
    %916 = vmatprep.subr.mxu0 %v710
    %917 = vmatpush2.msra.mxu0 %v709
    %918 = vmatprep.subr.mxu0 %v706
    %919 = vmatpush2.msra.mxu0 %v705
    %920 = vmatprep.mubr.f32.mxu0 %v512
    %921 = vmatmul.mubr.f32.gmra.mxu0 %v511
    %v922 = vpop.f32.mrf.mxu0
    %v923 = vadd.f32 %v852, %v922
    %v924 = vpop.f32.mrf.mxu0
    %v925 = vadd.f32 %v854, %v924
    %926 = vdwg.mxu0
    %927 = vmatprep.subr.mxu0 %v576
    %928 = vmatpush1.msra.mxu0 %v575
    %929 = vmatprep.subr.mxu0 %v572
    %930 = vmatpush1.msra.mxu0 %v571
    %931 = vmatprep.subr.mxu0 %v568
    %932 = vmatpush1.msra.mxu0 %v567
    %933 = vmatprep.subr.mxu0 %v564
    %934 = vmatpush1.msra.mxu0 %v563
    %935 = vmatprep.subr.mxu0 %v560
    %936 = vmatpush1.msra.mxu0 %v559
    %937 = vmatprep.subr.mxu0 %v556
    %938 = vmatpush1.msra.mxu0 %v555
    %939 = vmatprep.subr.mxu0 %v552
    %940 = vmatpush1.msra.mxu0 %v551
    %941 = vmatprep.subr.mxu0 %v548
    %942 = vmatpush1.msra.mxu0 %v547
    %943 = vmatprep.subr.mxu0 %v544
    %944 = vmatpush1.msra.mxu0 %v543
    %945 = vmatprep.subr.mxu0 %v540
    %946 = vmatpush1.msra.mxu0 %v539
    %947 = vmatprep.subr.mxu0 %v536
    %948 = vmatpush1.msra.mxu0 %v535
    %949 = vmatprep.subr.mxu0 %v532
    %950 = vmatpush1.msra.mxu0 %v531
    %951 = vmatprep.subr.mxu0 %v528
    %952 = vmatpush1.msra.mxu0 %v527
    %953 = vmatprep.subr.mxu0 %v524
    %954 = vmatpush1.msra.mxu0 %v523
    %955 = vmatprep.subr.mxu0 %v520
    %956 = vmatpush1.msra.mxu0 %v519
    %957 = vmatprep.subr.mxu0 %v516
    %958 = vmatpush1.msra.mxu0 %v515
    %959 = vmatprep.subr.mxu0 %v640
    %960 = vmatpush2.msra.mxu0 %v639
    %961 = vmatprep.subr.mxu0 %v636
    %962 = vmatpush2.msra.mxu0 %v635
    %963 = vmatprep.subr.mxu0 %v632
    %964 = vmatpush2.msra.mxu0 %v631
    %965 = vmatprep.subr.mxu0 %v628
    %966 = vmatpush2.msra.mxu0 %v627
    %967 = vmatprep.subr.mxu0 %v624
    %968 = vmatpush2.msra.mxu0 %v623
    %969 = vmatprep.subr.mxu0 %v620
    %970 = vmatpush2.msra.mxu0 %v619
    %971 = vmatprep.subr.mxu0 %v616
    %972 = vmatpush2.msra.mxu0 %v615
    %973 = vmatprep.subr.mxu0 %v612
    %974 = vmatpush2.msra.mxu0 %v611
    %975 = vmatprep.subr.mxu0 %v608
    %976 = vmatpush2.msra.mxu0 %v607
    %977 = vmatprep.subr.mxu0 %v604
    %978 = vmatpush2.msra.mxu0 %v603
    %979 = vmatprep.subr.mxu0 %v600
    %980 = vmatpush2.msra.mxu0 %v599
    %981 = vmatprep.subr.mxu0 %v596
    %982 = vmatpush2.msra.mxu0 %v595
    %983 = vmatprep.subr.mxu0 %v592
    %984 = vmatpush2.msra.mxu0 %v591
    %985 = vmatprep.subr.mxu0 %v588
    %986 = vmatpush2.msra.mxu0 %v587
    %987 = vmatprep.subr.mxu0 %v584
    %988 = vmatpush2.msra.mxu0 %v583
    %989 = vmatprep.subr.mxu0 %v580
    %990 = vmatpush2.msra.mxu0 %v579
    %991 = vmatprep.mubr.f32.mxu0 %v510
    %992 = vmatmul.mubr.f32.gmra.mxu0 %v509
    %v993 = vpop.f32.mrf.mxu0
    %v994 = vadd.f32 %v780, %v993
    %v995 = vpop.f32.mrf.mxu0
    %v996 = vadd.f32 %v784, %v995
    %997 = vdwg.mxu0
    %998 = vmatprep.subr.mxu0 %v704
    %999 = vmatpush1.msra.mxu0 %v703
    %1000 = vmatprep.subr.mxu0 %v700
    %1001 = vmatpush1.msra.mxu0 %v699
    %1002 = vmatprep.subr.mxu0 %v696
    %1003 = vmatpush1.msra.mxu0 %v695
    %1004 = vmatprep.subr.mxu0 %v692
    %1005 = vmatpush1.msra.mxu0 %v691
    %1006 = vmatprep.subr.mxu0 %v688
    %1007 = vmatpush1.msra.mxu0 %v687
    %1008 = vmatprep.subr.mxu0 %v684
    %1009 = vmatpush1.msra.mxu0 %v683
    %1010 = vmatprep.subr.mxu0 %v680
    %1011 = vmatpush1.msra.mxu0 %v679
    %1012 = vmatprep.subr.mxu0 %v676
    %1013 = vmatpush1.msra.mxu0 %v675
    %1014 = vmatprep.subr.mxu0 %v672
    %1015 = vmatpush1.msra.mxu0 %v671
    %1016 = vmatprep.subr.mxu0 %v668
    %1017 = vmatpush1.msra.mxu0 %v667
    %1018 = vmatprep.subr.mxu0 %v664
    %1019 = vmatpush1.msra.mxu0 %v663
    %1020 = vmatprep.subr.mxu0 %v660
    %1021 = vmatpush1.msra.mxu0 %v659
    %1022 = vmatprep.subr.mxu0 %v656
    %1023 = vmatpush1.msra.mxu0 %v655
    %1024 = vmatprep.subr.mxu0 %v652
    %1025 = vmatpush1.msra.mxu0 %v651
    %1026 = vmatprep.subr.mxu0 %v648
    %1027 = vmatpush1.msra.mxu0 %v647
    %1028 = vmatprep.subr.mxu0 %v644
    %1029 = vmatpush1.msra.mxu0 %v643
    %1030 = vmatprep.subr.mxu0 %v768
    %1031 = vmatpush2.msra.mxu0 %v767
    %1032 = vmatprep.subr.mxu0 %v764
    %1033 = vmatpush2.msra.mxu0 %v763
    %1034 = vmatprep.subr.mxu0 %v760
    %1035 = vmatpush2.msra.mxu0 %v759
    %1036 = vmatprep.subr.mxu0 %v756
    %1037 = vmatpush2.msra.mxu0 %v755
    %1038 = vmatprep.subr.mxu0 %v752
    %1039 = vmatpush2.msra.mxu0 %v751
    %1040 = vmatprep.subr.mxu0 %v748
    %1041 = vmatpush2.msra.mxu0 %v747
    %1042 = vmatprep.subr.mxu0 %v744
    %1043 = vmatpush2.msra.mxu0 %v743
    %1044 = vmatprep.subr.mxu0 %v740
    %1045 = vmatpush2.msra.mxu0 %v739
    %1046 = vmatprep.subr.mxu0 %v736
    %1047 = vmatpush2.msra.mxu0 %v735
    %1048 = vmatprep.subr.mxu0 %v732
    %1049 = vmatpush2.msra.mxu0 %v731
    %1050 = vmatprep.subr.mxu0 %v728
    %1051 = vmatpush2.msra.mxu0 %v727
    %1052 = vmatprep.subr.mxu0 %v724
    %1053 = vmatpush2.msra.mxu0 %v723
    %1054 = vmatprep.subr.mxu0 %v720
    %1055 = vmatpush2.msra.mxu0 %v719
    %1056 = vmatprep.subr.mxu0 %v716
    %1057 = vmatpush2.msra.mxu0 %v715
    %1058 = vmatprep.subr.mxu0 %v712
    %1059 = vmatpush2.msra.mxu0 %v711
    %1060 = vmatprep.subr.mxu0 %v708
    %1061 = vmatpush2.msra.mxu0 %v707
    %1062 = vmatprep.mubr.f32.mxu0 %v512
    %1063 = vmatmul.mubr.f32.gmra.mxu0 %v511
    %v1064 = vpop.f32.mrf.mxu0
    %v1065 = vadd.f32 %v994, %v1064
    %v1066 = vpop.f32.mrf.mxu0
    %v1067 = vadd.f32 %v996, %v1066
    %1068 = vdwg.mxu0
    %v1069 = vrot.slane %v923, 4
    %v1070 = vadd.f32 %v923, %v1069
    %v1071 = vrot.slane %v1070, 2
    %v1072 = vadd.f32 %v1070, %v1071
    %v1073 = vrot.slane %v1072, 1
    %v1074 = vadd.f32 %v1072, %v1073
    %v1075 = vrot.slane %v925, 4
    %v1076 = vadd.f32 %v925, %v1075
    %v1077 = vrot.slane %v1076, 2
    %v1078 = vadd.f32 %v1076, %v1077
    %v1079 = vrot.slane %v1078, 1
    %v1080 = vadd.f32 %v1078, %v1079
    %v1081 = vrot.slane %v1065, 4
    %v1082 = vadd.f32 %v1065, %v1081
    %v1083 = vrot.slane %v1082, 2
    %v1084 = vadd.f32 %v1082, %v1083
    %v1085 = vrot.slane %v1084, 1
    %v1086 = vadd.f32 %v1084, %v1085
    %v1087 = vrot.slane %v1067, 4
    %v1088 = vadd.f32 %v1067, %v1087
    %v1089 = vrot.slane %v1088, 2
    %v1090 = vadd.f32 %v1088, %v1089
    %v1091 = vrot.slane %v1090, 1
    %v1092 = vadd.f32 %v1090, %v1091
    %v1093 = vmul.f32 %v1074, %v392
    %v1094 = vmul.f32 %v1080, %v392
    %v1095 = vmul.f32 %v1086, %v392
    %v1096 = vmul.f32 %v1092, %v392
    %v1097 = vmul.f32 %v923, %v923
    %v1098 = vmul.f32 %v925, %v925
    %v1099 = vmul.f32 %v1065, %v1065
    %v1100 = vmul.f32 %v1067, %v1067
    %v1101 = vrot.slane %v1097, 4
    %v1102 = vadd.f32 %v1097, %v1101
    %v1103 = vrot.slane %v1102, 2
    %v1104 = vadd.f32 %v1102, %v1103
    %v1105 = vrot.slane %v1104, 1
    %v1106 = vadd.f32 %v1104, %v1105
    %v1107 = vrot.slane %v1098, 4
    %v1108 = vadd.f32 %v1098, %v1107
    %v1109 = vrot.slane %v1108, 2
    %v1110 = vadd.f32 %v1108, %v1109
    %v1111 = vrot.slane %v1110, 1
    %v1112 = vadd.f32 %v1110, %v1111
    %v1113 = vrot.slane %v1099, 4
    %v1114 = vadd.f32 %v1099, %v1113
    %v1115 = vrot.slane %v1114, 2
    %v1116 = vadd.f32 %v1114, %v1115
    %v1117 = vrot.slane %v1116, 1
    %v1118 = vadd.f32 %v1116, %v1117
    %v1119 = vrot.slane %v1100, 4
    %v1120 = vadd.f32 %v1100, %v1119
    %v1121 = vrot.slane %v1120, 2
    %v1122 = vadd.f32 %v1120, %v1121
    %v1123 = vrot.slane %v1122, 1
    %v1124 = vadd.f32 %v1122, %v1123
    %v1125 = vmul.f32 %v1106, %v392
    %v1126 = vmul.f32 %v1112, %v392
    %v1127 = vmul.f32 %v1118, %v392
    %v1128 = vmul.f32 %v1124, %v392
    %v1129 = vmul.f32 %v1093, %v1093
    %v1130 = vmul.f32 %v1094, %v1094
    %v1131 = vmul.f32 %v1095, %v1095
    %v1132 = vmul.f32 %v1096, %v1096
    %v1133 = vsub.f32 %v1125, %v1129
    %v1134 = vsub.f32 %v1126, %v1130
    %v1135 = vsub.f32 %v1127, %v1131
    %v1136 = vsub.f32 %v1128, %v1132
    %v1137 = vadd.f32 %v1133, 1e-05
    %v1138 = vadd.f32 %v1134, 1e-05
    %v1139 = vadd.f32 %v1135, 1e-05
    %v1140 = vadd.f32 %v1136, 1e-05
    %v1141 = vrsqrt.pop %v1137
    %v1142 = vrsqrt.pop %v1138
    %v1143 = vrsqrt.pop %v1139
    %v1144 = vrsqrt.pop %v1140
    %v1145 = vmul.f32 %v178, %v1141
    %v1146 = vmul.f32 %v179, %v1142
    %v1147 = vmul.f32 %v180, %v1143
    %v1148 = vmul.f32 %v181, %v1144
    %v1149 = vmul.f32 %v1093, %v1145
    %v1150 = vmul.f32 %v1094, %v1146
    %v1151 = vmul.f32 %v1095, %v1147
    %v1152 = vmul.f32 %v1096, %v1148
    %v1157 = vrot.slane %v1149, 7
    %v1158 = vrot.slane %v1150, 7
    %v1159 = vrot.slane %v1151, 7
    %v1160 = vrot.slane %v1152, 7
    %v1165 = vsub.f32 %v178, %v1157
    %v1166 = vsub.f32 %v179, %v1158
    %v1167 = vsub.f32 %v180, %v1159
    %v1168 = vsub.f32 %v181, %v1160
    %v1169 = vlaneseq
    %v1170 = vshrl.u32 %v1169, 7
    %v1171 = vsub.s32 4, %v1170
    %v1172 = vrot.slane %v1145, %v1171
    %v1173 = vlaneseq
    %v1174 = vshrl.u32 %v1173, 7
    %v1175 = vsub.s32 4, %v1174
    %v1176 = vrot.slane %v1146, %v1175
    %v1177 = vlaneseq
    %v1178 = vshrl.u32 %v1177, 7
    %v1179 = vsub.s32 4, %v1178
    %v1180 = vrot.slane %v1147, %v1179
    %v1181 = vlaneseq
    %v1182 = vshrl.u32 %v1181, 7
    %v1183 = vsub.s32 4, %v1182
    %v1184 = vrot.slane %v1148, %v1183
    %v1185 = vmul.f32 %v923, %v1172
    %v1186 = vmul.f32 %v925, %v1176
    %v1187 = vmul.f32 %v1065, %v1180
    %v1188 = vmul.f32 %v1067, %v1184
    %v1189 = vlaneseq
    %v1190 = vshrl.u32 %v1189, 7
    %v1191 = vsub.s32 5, %v1190
    %v1192 = vrot.slane %v1165, %v1191
    %v1193 = vlaneseq
    %v1194 = vshrl.u32 %v1193, 7
    %v1195 = vsub.s32 5, %v1194
    %v1196 = vrot.slane %v1166, %v1195
    %v1197 = vlaneseq
    %v1198 = vshrl.u32 %v1197, 7
    %v1199 = vsub.s32 5, %v1198
    %v1200 = vrot.slane %v1167, %v1199
    %v1201 = vlaneseq
    %v1202 = vshrl.u32 %v1201, 7
    %v1203 = vsub.s32 5, %v1202
    %v1204 = vrot.slane %v1168, %v1203
    %v1205 = vadd.f32 %v1185, %v1192
    %v1206 = vadd.f32 %v1186, %v1196
    %v1207 = vadd.f32 %v1187, %v1200
    %v1208 = vadd.f32 %v1188, %v1204
    %v1209 = vmax.f32 %v1205, 0.0
    %v1210 = vmax.f32 %v1206, 0.0
    %v1211 = vmax.f32 %v1207, 0.0
    %v1212 = vmax.f32 %v1208, 0.0
    %v1213 = vld [vmem:[#allocation9] sm:$0xff]
    %v1214 = vld [vmem:[#allocation9 + $0x8] sm:$0xff]
    %v1215 = vld [vmem:[#allocation9 + $0x10] sm:$0xff]
    %v1216 = vld [vmem:[#allocation9 + $0x18] sm:$0xff]
    %v1217 = vmul.f32 %v1209, %v1213
    %v1218 = vmul.f32 %v1210, %v1214
    %v1219 = vmul.f32 %v1211, %v1215
    %v1220 = vmul.f32 %v1212, %v1216
    %v1221 = vld [vmem:[#allocation6] sm:$0xff]
    %v1222 = vld [vmem:[#allocation6 + $0x8] sm:$0xff]
    %v1223 = vld [vmem:[#allocation6 + $0x10] sm:$0xff]
    %v1224 = vld [vmem:[#allocation6 + $0x18] sm:$0xff]
    %v1225 = vld [vmem:[#allocation6 + $0x20] sm:$0xff]
    %v1226 = vld [vmem:[#allocation6 + $0x28] sm:$0xff]
    %v1227 = vld [vmem:[#allocation6 + $0x30] sm:$0xff]
    %v1228 = vld [vmem:[#allocation6 + $0x38] sm:$0xff]
    %v1229 = vld [vmem:[#allocation6 + $0x40] sm:$0xff]
    %v1230 = vld [vmem:[#allocation6 + $0x48] sm:$0xff]
    %v1231 = vld [vmem:[#allocation6 + $0x50] sm:$0xff]
    %v1232 = vld [vmem:[#allocation6 + $0x58] sm:$0xff]
    %v1233 = vld [vmem:[#allocation6 + $0x60] sm:$0xff]
    %v1234 = vld [vmem:[#allocation6 + $0x68] sm:$0xff]
    %v1235 = vld [vmem:[#allocation6 + $0x70] sm:$0xff]
    %v1236 = vld [vmem:[#allocation6 + $0x78] sm:$0xff]
    %v1237 = vld [vmem:[#allocation6 + $0x80] sm:$0xff]
    %v1238 = vld [vmem:[#allocation6 + $0x88] sm:$0xff]
    %v1239 = vld [vmem:[#allocation6 + $0x90] sm:$0xff]
    %v1240 = vld [vmem:[#allocation6 + $0x98] sm:$0xff]
    %v1241 = vld [vmem:[#allocation6 + $0xa0] sm:$0xff]
    %v1242 = vld [vmem:[#allocation6 + $0xa8] sm:$0xff]
    %v1243 = vld [vmem:[#allocation6 + $0xb0] sm:$0xff]
    %v1244 = vld [vmem:[#allocation6 + $0xb8] sm:$0xff]
    %v1245 = vld [vmem:[#allocation6 + $0xc0] sm:$0xff]
    %v1246 = vld [vmem:[#allocation6 + $0xc8] sm:$0xff]
    %v1247 = vld [vmem:[#allocation6 + $0xd0] sm:$0xff]
    %v1248 = vld [vmem:[#allocation6 + $0xd8] sm:$0xff]
    %v1249 = vld [vmem:[#allocation6 + $0xe0] sm:$0xff]
    %v1250 = vld [vmem:[#allocation6 + $0xe8] sm:$0xff]
    %v1251 = vld [vmem:[#allocation6 + $0xf0] sm:$0xff]
    %v1252 = vld [vmem:[#allocation6 + $0xf8] sm:$0xff]
    %v1253 = vld [vmem:[#allocation6 + $0x100] sm:$0xff]
    %v1254 = vld [vmem:[#allocation6 + $0x108] sm:$0xff]
    %v1255 = vld [vmem:[#allocation6 + $0x110] sm:$0xff]
    %v1256 = vld [vmem:[#allocation6 + $0x118] sm:$0xff]
    %v1257 = vld [vmem:[#allocation6 + $0x120] sm:$0xff]
    %v1258 = vld [vmem:[#allocation6 + $0x128] sm:$0xff]
    %v1259 = vld [vmem:[#allocation6 + $0x130] sm:$0xff]
    %v1260 = vld [vmem:[#allocation6 + $0x138] sm:$0xff]
    %v1261 = vld [vmem:[#allocation6 + $0x140] sm:$0xff]
    %v1262 = vld [vmem:[#allocation6 + $0x148] sm:$0xff]
    %v1263 = vld [vmem:[#allocation6 + $0x150] sm:$0xff]
    %v1264 = vld [vmem:[#allocation6 + $0x158] sm:$0xff]
    %v1265 = vld [vmem:[#allocation6 + $0x160] sm:$0xff]
    %v1266 = vld [vmem:[#allocation6 + $0x168] sm:$0xff]
    %v1267 = vld [vmem:[#allocation6 + $0x170] sm:$0xff]
    %v1268 = vld [vmem:[#allocation6 + $0x178] sm:$0xff]
    %v1269 = vld [vmem:[#allocation6 + $0x180] sm:$0xff]
    %v1270 = vld [vmem:[#allocation6 + $0x188] sm:$0xff]
    %v1271 = vld [vmem:[#allocation6 + $0x190] sm:$0xff]
    %v1272 = vld [vmem:[#allocation6 + $0x198] sm:$0xff]
    %v1273 = vld [vmem:[#allocation6 + $0x1a0] sm:$0xff]
    %v1274 = vld [vmem:[#allocation6 + $0x1a8] sm:$0xff]
    %v1275 = vld [vmem:[#allocation6 + $0x1b0] sm:$0xff]
    %v1276 = vld [vmem:[#allocation6 + $0x1b8] sm:$0xff]
    %v1277 = vld [vmem:[#allocation6 + $0x1c0] sm:$0xff]
    %v1278 = vld [vmem:[#allocation6 + $0x1c8] sm:$0xff]
    %v1279 = vld [vmem:[#allocation6 + $0x1d0] sm:$0xff]
    %v1280 = vld [vmem:[#allocation6 + $0x1d8] sm:$0xff]
    %v1281 = vld [vmem:[#allocation6 + $0x1e0] sm:$0xff]
    %v1282 = vld [vmem:[#allocation6 + $0x1e8] sm:$0xff]
    %v1283 = vld [vmem:[#allocation6 + $0x1f0] sm:$0xff]
    %v1284 = vld [vmem:[#allocation6 + $0x1f8] sm:$0xff]
    %v1285 = vld [vmem:[#allocation6 + $0x200] sm:$0xff]
    %v1286 = vld [vmem:[#allocation6 + $0x208] sm:$0xff]
    %v1287 = vld [vmem:[#allocation6 + $0x210] sm:$0xff]
    %v1288 = vld [vmem:[#allocation6 + $0x218] sm:$0xff]
    %v1289 = vld [vmem:[#allocation6 + $0x220] sm:$0xff]
    %v1290 = vld [vmem:[#allocation6 + $0x228] sm:$0xff]
    %v1291 = vld [vmem:[#allocation6 + $0x230] sm:$0xff]
    %v1292 = vld [vmem:[#allocation6 + $0x238] sm:$0xff]
    %v1293 = vld [vmem:[#allocation6 + $0x240] sm:$0xff]
    %v1294 = vld [vmem:[#allocation6 + $0x248] sm:$0xff]
    %v1295 = vld [vmem:[#allocation6 + $0x250] sm:$0xff]
    %v1296 = vld [vmem:[#allocation6 + $0x258] sm:$0xff]
    %v1297 = vld [vmem:[#allocation6 + $0x260] sm:$0xff]
    %v1298 = vld [vmem:[#allocation6 + $0x268] sm:$0xff]
    %v1299 = vld [vmem:[#allocation6 + $0x270] sm:$0xff]
    %v1300 = vld [vmem:[#allocation6 + $0x278] sm:$0xff]
    %v1301 = vld [vmem:[#allocation6 + $0x280] sm:$0xff]
    %v1302 = vld [vmem:[#allocation6 + $0x288] sm:$0xff]
    %v1303 = vld [vmem:[#allocation6 + $0x290] sm:$0xff]
    %v1304 = vld [vmem:[#allocation6 + $0x298] sm:$0xff]
    %v1305 = vld [vmem:[#allocation6 + $0x2a0] sm:$0xff]
    %v1306 = vld [vmem:[#allocation6 + $0x2a8] sm:$0xff]
    %v1307 = vld [vmem:[#allocation6 + $0x2b0] sm:$0xff]
    %v1308 = vld [vmem:[#allocation6 + $0x2b8] sm:$0xff]
    %v1309 = vld [vmem:[#allocation6 + $0x2c0] sm:$0xff]
    %v1310 = vld [vmem:[#allocation6 + $0x2c8] sm:$0xff]
    %v1311 = vld [vmem:[#allocation6 + $0x2d0] sm:$0xff]
    %v1312 = vld [vmem:[#allocation6 + $0x2d8] sm:$0xff]
    %v1313 = vld [vmem:[#allocation6 + $0x2e0] sm:$0xff]
    %v1314 = vld [vmem:[#allocation6 + $0x2e8] sm:$0xff]
    %v1315 = vld [vmem:[#allocation6 + $0x2f0] sm:$0xff]
    %v1316 = vld [vmem:[#allocation6 + $0x2f8] sm:$0xff]
    %v1317 = vld [vmem:[#allocation6 + $0x300] sm:$0xff]
    %v1318 = vld [vmem:[#allocation6 + $0x308] sm:$0xff]
    %v1319 = vld [vmem:[#allocation6 + $0x310] sm:$0xff]
    %v1320 = vld [vmem:[#allocation6 + $0x318] sm:$0xff]
    %v1321 = vld [vmem:[#allocation6 + $0x320] sm:$0xff]
    %v1322 = vld [vmem:[#allocation6 + $0x328] sm:$0xff]
    %v1323 = vld [vmem:[#allocation6 + $0x330] sm:$0xff]
    %v1324 = vld [vmem:[#allocation6 + $0x338] sm:$0xff]
    %v1325 = vld [vmem:[#allocation6 + $0x340] sm:$0xff]
    %v1326 = vld [vmem:[#allocation6 + $0x348] sm:$0xff]
    %v1327 = vld [vmem:[#allocation6 + $0x350] sm:$0xff]
    %v1328 = vld [vmem:[#allocation6 + $0x358] sm:$0xff]
    %v1329 = vld [vmem:[#allocation6 + $0x360] sm:$0xff]
    %v1330 = vld [vmem:[#allocation6 + $0x368] sm:$0xff]
    %v1331 = vld [vmem:[#allocation6 + $0x370] sm:$0xff]
    %v1332 = vld [vmem:[#allocation6 + $0x378] sm:$0xff]
    %v1333 = vld [vmem:[#allocation6 + $0x380] sm:$0xff]
    %v1334 = vld [vmem:[#allocation6 + $0x388] sm:$0xff]
    %v1335 = vld [vmem:[#allocation6 + $0x390] sm:$0xff]
    %v1336 = vld [vmem:[#allocation6 + $0x398] sm:$0xff]
    %v1337 = vld [vmem:[#allocation6 + $0x3a0] sm:$0xff]
    %v1338 = vld [vmem:[#allocation6 + $0x3a8] sm:$0xff]
    %v1339 = vld [vmem:[#allocation6 + $0x3b0] sm:$0xff]
    %v1340 = vld [vmem:[#allocation6 + $0x3b8] sm:$0xff]
    %v1341 = vld [vmem:[#allocation6 + $0x3c0] sm:$0xff]
    %v1342 = vld [vmem:[#allocation6 + $0x3c8] sm:$0xff]
    %v1343 = vld [vmem:[#allocation6 + $0x3d0] sm:$0xff]
    %v1344 = vld [vmem:[#allocation6 + $0x3d8] sm:$0xff]
    %v1345 = vld [vmem:[#allocation6 + $0x3e0] sm:$0xff]
    %v1346 = vld [vmem:[#allocation6 + $0x3e8] sm:$0xff]
    %v1347 = vld [vmem:[#allocation6 + $0x3f0] sm:$0xff]
    %v1348 = vld [vmem:[#allocation6 + $0x3f8] sm:$0xff]
    %v1349 = vld [vmem:[#allocation6 + $0x400] sm:$0xff]
    %v1350 = vld [vmem:[#allocation6 + $0x408] sm:$0xff]
    %v1351 = vld [vmem:[#allocation6 + $0x410] sm:$0xff]
    %v1352 = vld [vmem:[#allocation6 + $0x418] sm:$0xff]
    %v1353 = vld [vmem:[#allocation6 + $0x420] sm:$0xff]
    %v1354 = vld [vmem:[#allocation6 + $0x428] sm:$0xff]
    %v1355 = vld [vmem:[#allocation6 + $0x430] sm:$0xff]
    %v1356 = vld [vmem:[#allocation6 + $0x438] sm:$0xff]
    %v1357 = vld [vmem:[#allocation6 + $0x440] sm:$0xff]
    %v1358 = vld [vmem:[#allocation6 + $0x448] sm:$0xff]
    %v1359 = vld [vmem:[#allocation6 + $0x450] sm:$0xff]
    %v1360 = vld [vmem:[#allocation6 + $0x458] sm:$0xff]
    %v1361 = vld [vmem:[#allocation6 + $0x460] sm:$0xff]
    %v1362 = vld [vmem:[#allocation6 + $0x468] sm:$0xff]
    %v1363 = vld [vmem:[#allocation6 + $0x470] sm:$0xff]
    %v1364 = vld [vmem:[#allocation6 + $0x478] sm:$0xff]
    %v1365 = vld [vmem:[#allocation6 + $0x480] sm:$0xff]
    %v1366 = vld [vmem:[#allocation6 + $0x488] sm:$0xff]
    %v1367 = vld [vmem:[#allocation6 + $0x490] sm:$0xff]
    %v1368 = vld [vmem:[#allocation6 + $0x498] sm:$0xff]
    %v1369 = vld [vmem:[#allocation6 + $0x4a0] sm:$0xff]
    %v1370 = vld [vmem:[#allocation6 + $0x4a8] sm:$0xff]
    %v1371 = vld [vmem:[#allocation6 + $0x4b0] sm:$0xff]
    %v1372 = vld [vmem:[#allocation6 + $0x4b8] sm:$0xff]
    %v1373 = vld [vmem:[#allocation6 + $0x4c0] sm:$0xff]
    %v1374 = vld [vmem:[#allocation6 + $0x4c8] sm:$0xff]
    %v1375 = vld [vmem:[#allocation6 + $0x4d0] sm:$0xff]
    %v1376 = vld [vmem:[#allocation6 + $0x4d8] sm:$0xff]
    %v1377 = vld [vmem:[#allocation6 + $0x4e0] sm:$0xff]
    %v1378 = vld [vmem:[#allocation6 + $0x4e8] sm:$0xff]
    %v1379 = vld [vmem:[#allocation6 + $0x4f0] sm:$0xff]
    %v1380 = vld [vmem:[#allocation6 + $0x4f8] sm:$0xff]
    %v1381 = vld [vmem:[#allocation6 + $0x500] sm:$0xff]
    %v1382 = vld [vmem:[#allocation6 + $0x508] sm:$0xff]
    %v1383 = vld [vmem:[#allocation6 + $0x510] sm:$0xff]
    %v1384 = vld [vmem:[#allocation6 + $0x518] sm:$0xff]
    %v1385 = vld [vmem:[#allocation6 + $0x520] sm:$0xff]
    %v1386 = vld [vmem:[#allocation6 + $0x528] sm:$0xff]
    %v1387 = vld [vmem:[#allocation6 + $0x530] sm:$0xff]
    %v1388 = vld [vmem:[#allocation6 + $0x538] sm:$0xff]
    %v1389 = vld [vmem:[#allocation6 + $0x540] sm:$0xff]
    %v1390 = vld [vmem:[#allocation6 + $0x548] sm:$0xff]
    %v1391 = vld [vmem:[#allocation6 + $0x550] sm:$0xff]
    %v1392 = vld [vmem:[#allocation6 + $0x558] sm:$0xff]
    %v1393 = vld [vmem:[#allocation6 + $0x560] sm:$0xff]
    %v1394 = vld [vmem:[#allocation6 + $0x568] sm:$0xff]
    %v1395 = vld [vmem:[#allocation6 + $0x570] sm:$0xff]
    %v1396 = vld [vmem:[#allocation6 + $0x578] sm:$0xff]
    %v1397 = vld [vmem:[#allocation6 + $0x580] sm:$0xff]
    %v1398 = vld [vmem:[#allocation6 + $0x588] sm:$0xff]
    %v1399 = vld [vmem:[#allocation6 + $0x590] sm:$0xff]
    %v1400 = vld [vmem:[#allocation6 + $0x598] sm:$0xff]
    %v1401 = vld [vmem:[#allocation6 + $0x5a0] sm:$0xff]
    %v1402 = vld [vmem:[#allocation6 + $0x5a8] sm:$0xff]
    %v1403 = vld [vmem:[#allocation6 + $0x5b0] sm:$0xff]
    %v1404 = vld [vmem:[#allocation6 + $0x5b8] sm:$0xff]
    %v1405 = vld [vmem:[#allocation6 + $0x5c0] sm:$0xff]
    %v1406 = vld [vmem:[#allocation6 + $0x5c8] sm:$0xff]
    %v1407 = vld [vmem:[#allocation6 + $0x5d0] sm:$0xff]
    %v1408 = vld [vmem:[#allocation6 + $0x5d8] sm:$0xff]
    %v1409 = vld [vmem:[#allocation6 + $0x5e0] sm:$0xff]
    %v1410 = vld [vmem:[#allocation6 + $0x5e8] sm:$0xff]
    %v1411 = vld [vmem:[#allocation6 + $0x5f0] sm:$0xff]
    %v1412 = vld [vmem:[#allocation6 + $0x5f8] sm:$0xff]
    %v1413 = vld [vmem:[#allocation6 + $0x600] sm:$0xff]
    %v1414 = vld [vmem:[#allocation6 + $0x608] sm:$0xff]
    %v1415 = vld [vmem:[#allocation6 + $0x610] sm:$0xff]
    %v1416 = vld [vmem:[#allocation6 + $0x618] sm:$0xff]
    %v1417 = vld [vmem:[#allocation6 + $0x620] sm:$0xff]
    %v1418 = vld [vmem:[#allocation6 + $0x628] sm:$0xff]
    %v1419 = vld [vmem:[#allocation6 + $0x630] sm:$0xff]
    %v1420 = vld [vmem:[#allocation6 + $0x638] sm:$0xff]
    %v1421 = vld [vmem:[#allocation6 + $0x640] sm:$0xff]
    %v1422 = vld [vmem:[#allocation6 + $0x648] sm:$0xff]
    %v1423 = vld [vmem:[#allocation6 + $0x650] sm:$0xff]
    %v1424 = vld [vmem:[#allocation6 + $0x658] sm:$0xff]
    %v1425 = vld [vmem:[#allocation6 + $0x660] sm:$0xff]
    %v1426 = vld [vmem:[#allocation6 + $0x668] sm:$0xff]
    %v1427 = vld [vmem:[#allocation6 + $0x670] sm:$0xff]
    %v1428 = vld [vmem:[#allocation6 + $0x678] sm:$0xff]
    %v1429 = vld [vmem:[#allocation6 + $0x680] sm:$0xff]
    %v1430 = vld [vmem:[#allocation6 + $0x688] sm:$0xff]
    %v1431 = vld [vmem:[#allocation6 + $0x690] sm:$0xff]
    %v1432 = vld [vmem:[#allocation6 + $0x698] sm:$0xff]
    %v1433 = vld [vmem:[#allocation6 + $0x6a0] sm:$0xff]
    %v1434 = vld [vmem:[#allocation6 + $0x6a8] sm:$0xff]
    %v1435 = vld [vmem:[#allocation6 + $0x6b0] sm:$0xff]
    %v1436 = vld [vmem:[#allocation6 + $0x6b8] sm:$0xff]
    %v1437 = vld [vmem:[#allocation6 + $0x6c0] sm:$0xff]
    %v1438 = vld [vmem:[#allocation6 + $0x6c8] sm:$0xff]
    %v1439 = vld [vmem:[#allocation6 + $0x6d0] sm:$0xff]
    %v1440 = vld [vmem:[#allocation6 + $0x6d8] sm:$0xff]
    %v1441 = vld [vmem:[#allocation6 + $0x6e0] sm:$0xff]
    %v1442 = vld [vmem:[#allocation6 + $0x6e8] sm:$0xff]
    %v1443 = vld [vmem:[#allocation6 + $0x6f0] sm:$0xff]
    %v1444 = vld [vmem:[#allocation6 + $0x6f8] sm:$0xff]
    %v1445 = vld [vmem:[#allocation6 + $0x700] sm:$0xff]
    %v1446 = vld [vmem:[#allocation6 + $0x708] sm:$0xff]
    %v1447 = vld [vmem:[#allocation6 + $0x710] sm:$0xff]
    %v1448 = vld [vmem:[#allocation6 + $0x718] sm:$0xff]
    %v1449 = vld [vmem:[#allocation6 + $0x720] sm:$0xff]
    %v1450 = vld [vmem:[#allocation6 + $0x728] sm:$0xff]
    %v1451 = vld [vmem:[#allocation6 + $0x730] sm:$0xff]
    %v1452 = vld [vmem:[#allocation6 + $0x738] sm:$0xff]
    %v1453 = vld [vmem:[#allocation6 + $0x740] sm:$0xff]
    %v1454 = vld [vmem:[#allocation6 + $0x748] sm:$0xff]
    %v1455 = vld [vmem:[#allocation6 + $0x750] sm:$0xff]
    %v1456 = vld [vmem:[#allocation6 + $0x758] sm:$0xff]
    %v1457 = vld [vmem:[#allocation6 + $0x760] sm:$0xff]
    %v1458 = vld [vmem:[#allocation6 + $0x768] sm:$0xff]
    %v1459 = vld [vmem:[#allocation6 + $0x770] sm:$0xff]
    %v1460 = vld [vmem:[#allocation6 + $0x778] sm:$0xff]
    %v1461 = vld [vmem:[#allocation6 + $0x780] sm:$0xff]
    %v1462 = vld [vmem:[#allocation6 + $0x788] sm:$0xff]
    %v1463 = vld [vmem:[#allocation6 + $0x790] sm:$0xff]
    %v1464 = vld [vmem:[#allocation6 + $0x798] sm:$0xff]
    %v1465 = vld [vmem:[#allocation6 + $0x7a0] sm:$0xff]
    %v1466 = vld [vmem:[#allocation6 + $0x7a8] sm:$0xff]
    %v1467 = vld [vmem:[#allocation6 + $0x7b0] sm:$0xff]
    %v1468 = vld [vmem:[#allocation6 + $0x7b8] sm:$0xff]
    %v1469 = vld [vmem:[#allocation6 + $0x7c0] sm:$0xff]
    %v1470 = vld [vmem:[#allocation6 + $0x7c8] sm:$0xff]
    %v1471 = vld [vmem:[#allocation6 + $0x7d0] sm:$0xff]
    %v1472 = vld [vmem:[#allocation6 + $0x7d8] sm:$0xff]
    %v1473 = vld [vmem:[#allocation6 + $0x7e0] sm:$0xff]
    %v1474 = vld [vmem:[#allocation6 + $0x7e8] sm:$0xff]
    %v1475 = vld [vmem:[#allocation6 + $0x7f0] sm:$0xff]
    %v1476 = vld [vmem:[#allocation6 + $0x7f8] sm:$0xff]
    %v1477 = vlaneseq
    %v1478 = vshrl.u32 %v1477, 7
    %v1479 = vsub.s32 6, %v1478
    %v1480 = vrot.slane %v178, %v1479
    %v1481 = vlaneseq
    %v1482 = vshrl.u32 %v1481, 7
    %v1483 = vsub.s32 6, %v1482
    %v1484 = vrot.slane %v179, %v1483
    %v1485 = vlaneseq
    %v1486 = vshrl.u32 %v1485, 7
    %v1487 = vsub.s32 6, %v1486
    %v1488 = vrot.slane %v180, %v1487
    %v1489 = vlaneseq
    %v1490 = vshrl.u32 %v1489, 7
    %v1491 = vsub.s32 6, %v1490
    %v1492 = vrot.slane %v181, %v1491
    %1493 = vmatprep.subr.mxu0 %v1282
    %1494 = vmatpush1.msra.mxu0 %v1281
    %1495 = vmatprep.subr.mxu0 %v1278
    %1496 = vmatpush1.msra.mxu0 %v1277
    %1497 = vmatprep.subr.mxu0 %v1274
    %1498 = vmatpush1.msra.mxu0 %v1273
    %1499 = vmatprep.subr.mxu0 %v1270
    %1500 = vmatpush1.msra.mxu0 %v1269
    %1501 = vmatprep.subr.mxu0 %v1266
    %1502 = vmatpush1.msra.mxu0 %v1265
    %1503 = vmatprep.subr.mxu0 %v1262
    %1504 = vmatpush1.msra.mxu0 %v1261
    %1505 = vmatprep.subr.mxu0 %v1258
    %1506 = vmatpush1.msra.mxu0 %v1257
    %1507 = vmatprep.subr.mxu0 %v1254
    %1508 = vmatpush1.msra.mxu0 %v1253
    %1509 = vmatprep.subr.mxu0 %v1250
    %1510 = vmatpush1.msra.mxu0 %v1249
    %1511 = vmatprep.subr.mxu0 %v1246
    %1512 = vmatpush1.msra.mxu0 %v1245
    %1513 = vmatprep.subr.mxu0 %v1242
    %1514 = vmatpush1.msra.mxu0 %v1241
    %1515 = vmatprep.subr.mxu0 %v1238
    %1516 = vmatpush1.msra.mxu0 %v1237
    %1517 = vmatprep.subr.mxu0 %v1234
    %1518 = vmatpush1.msra.mxu0 %v1233
    %1519 = vmatprep.subr.mxu0 %v1230
    %1520 = vmatpush1.msra.mxu0 %v1229
    %1521 = vmatprep.subr.mxu0 %v1226
    %1522 = vmatpush1.msra.mxu0 %v1225
    %1523 = vmatprep.subr.mxu0 %v1222
    %1524 = vmatpush1.msra.mxu0 %v1221
    %1525 = vmatprep.subr.mxu0 %v1346
    %1526 = vmatpush2.msra.mxu0 %v1345
    %1527 = vmatprep.subr.mxu0 %v1342
    %1528 = vmatpush2.msra.mxu0 %v1341
    %1529 = vmatprep.subr.mxu0 %v1338
    %1530 = vmatpush2.msra.mxu0 %v1337
    %1531 = vmatprep.subr.mxu0 %v1334
    %1532 = vmatpush2.msra.mxu0 %v1333
    %1533 = vmatprep.subr.mxu0 %v1330
    %1534 = vmatpush2.msra.mxu0 %v1329
    %1535 = vmatprep.subr.mxu0 %v1326
    %1536 = vmatpush2.msra.mxu0 %v1325
    %1537 = vmatprep.subr.mxu0 %v1322
    %1538 = vmatpush2.msra.mxu0 %v1321
    %1539 = vmatprep.subr.mxu0 %v1318
    %1540 = vmatpush2.msra.mxu0 %v1317
    %1541 = vmatprep.subr.mxu0 %v1314
    %1542 = vmatpush2.msra.mxu0 %v1313
    %1543 = vmatprep.subr.mxu0 %v1310
    %1544 = vmatpush2.msra.mxu0 %v1309
    %1545 = vmatprep.subr.mxu0 %v1306
    %1546 = vmatpush2.msra.mxu0 %v1305
    %1547 = vmatprep.subr.mxu0 %v1302
    %1548 = vmatpush2.msra.mxu0 %v1301
    %1549 = vmatprep.subr.mxu0 %v1298
    %1550 = vmatpush2.msra.mxu0 %v1297
    %1551 = vmatprep.subr.mxu0 %v1294
    %1552 = vmatpush2.msra.mxu0 %v1293
    %1553 = vmatprep.subr.mxu0 %v1290
    %1554 = vmatpush2.msra.mxu0 %v1289
    %1555 = vmatprep.subr.mxu0 %v1286
    %1556 = vmatpush2.msra.mxu0 %v1285
    %1557 = vmatprep.mubr.f32.mxu0 %v1218
    %1558 = vmatmul.mubr.f32.gmra.mxu0 %v1217
    %v1559 = vpop.f32.mrf.mxu0
    %v1560 = vadd.f32 %v1480, %v1559
    %v1561 = vpop.f32.mrf.mxu0
    %v1562 = vadd.f32 %v1484, %v1561
    %1563 = vdwg.mxu0
    %1564 = vmatprep.subr.mxu0 %v1410
    %1565 = vmatpush1.msra.mxu0 %v1409
    %1566 = vmatprep.subr.mxu0 %v1406
    %1567 = vmatpush1.msra.mxu0 %v1405
    %1568 = vmatprep.subr.mxu0 %v1402
    %1569 = vmatpush1.msra.mxu0 %v1401
    %1570 = vmatprep.subr.mxu0 %v1398
    %1571 = vmatpush1.msra.mxu0 %v1397
    %1572 = vmatprep.subr.mxu0 %v1394
    %1573 = vmatpush1.msra.mxu0 %v1393
    %1574 = vmatprep.subr.mxu0 %v1390
    %1575 = vmatpush1.msra.mxu0 %v1389
    %1576 = vmatprep.subr.mxu0 %v1386
    %1577 = vmatpush1.msra.mxu0 %v1385
    %1578 = vmatprep.subr.mxu0 %v1382
    %1579 = vmatpush1.msra.mxu0 %v1381
    %1580 = vmatprep.subr.mxu0 %v1378
    %1581 = vmatpush1.msra.mxu0 %v1377
    %1582 = vmatprep.subr.mxu0 %v1374
    %1583 = vmatpush1.msra.mxu0 %v1373
    %1584 = vmatprep.subr.mxu0 %v1370
    %1585 = vmatpush1.msra.mxu0 %v1369
    %1586 = vmatprep.subr.mxu0 %v1366
    %1587 = vmatpush1.msra.mxu0 %v1365
    %1588 = vmatprep.subr.mxu0 %v1362
    %1589 = vmatpush1.msra.mxu0 %v1361
    %1590 = vmatprep.subr.mxu0 %v1358
    %1591 = vmatpush1.msra.mxu0 %v1357
    %1592 = vmatprep.subr.mxu0 %v1354
    %1593 = vmatpush1.msra.mxu0 %v1353
    %1594 = vmatprep.subr.mxu0 %v1350
    %1595 = vmatpush1.msra.mxu0 %v1349
    %1596 = vmatprep.subr.mxu0 %v1474
    %1597 = vmatpush2.msra.mxu0 %v1473
    %1598 = vmatprep.subr.mxu0 %v1470
    %1599 = vmatpush2.msra.mxu0 %v1469
    %1600 = vmatprep.subr.mxu0 %v1466
    %1601 = vmatpush2.msra.mxu0 %v1465
    %1602 = vmatprep.subr.mxu0 %v1462
    %1603 = vmatpush2.msra.mxu0 %v1461
    %1604 = vmatprep.subr.mxu0 %v1458
    %1605 = vmatpush2.msra.mxu0 %v1457
    %1606 = vmatprep.subr.mxu0 %v1454
    %1607 = vmatpush2.msra.mxu0 %v1453
    %1608 = vmatprep.subr.mxu0 %v1450
    %1609 = vmatpush2.msra.mxu0 %v1449
    %1610 = vmatprep.subr.mxu0 %v1446
    %1611 = vmatpush2.msra.mxu0 %v1445
    %1612 = vmatprep.subr.mxu0 %v1442
    %1613 = vmatpush2.msra.mxu0 %v1441
    %1614 = vmatprep.subr.mxu0 %v1438
    %1615 = vmatpush2.msra.mxu0 %v1437
    %1616 = vmatprep.subr.mxu0 %v1434
    %1617 = vmatpush2.msra.mxu0 %v1433
    %1618 = vmatprep.subr.mxu0 %v1430
    %1619 = vmatpush2.msra.mxu0 %v1429
    %1620 = vmatprep.subr.mxu0 %v1426
    %1621 = vmatpush2.msra.mxu0 %v1425
    %1622 = vmatprep.subr.mxu0 %v1422
    %1623 = vmatpush2.msra.mxu0 %v1421
    %1624 = vmatprep.subr.mxu0 %v1418
    %1625 = vmatpush2.msra.mxu0 %v1417
    %1626 = vmatprep.subr.mxu0 %v1414
    %1627 = vmatpush2.msra.mxu0 %v1413
    %1628 = vmatprep.mubr.f32.mxu0 %v1220
    %1629 = vmatmul.mubr.f32.gmra.mxu0 %v1219
    %v1630 = vpop.f32.mrf.mxu0
    %v1631 = vadd.f32 %v1560, %v1630
    %v1632 = vpop.f32.mrf.mxu0
    %v1633 = vadd.f32 %v1562, %v1632
    %1634 = vdwg.mxu0
    %1635 = vmatprep.subr.mxu0 %v1284
    %1636 = vmatpush1.msra.mxu0 %v1283
    %1637 = vmatprep.subr.mxu0 %v1280
    %1638 = vmatpush1.msra.mxu0 %v1279
    %1639 = vmatprep.subr.mxu0 %v1276
    %1640 = vmatpush1.msra.mxu0 %v1275
    %1641 = vmatprep.subr.mxu0 %v1272
    %1642 = vmatpush1.msra.mxu0 %v1271
    %1643 = vmatprep.subr.mxu0 %v1268
    %1644 = vmatpush1.msra.mxu0 %v1267
    %1645 = vmatprep.subr.mxu0 %v1264
    %1646 = vmatpush1.msra.mxu0 %v1263
    %1647 = vmatprep.subr.mxu0 %v1260
    %1648 = vmatpush1.msra.mxu0 %v1259
    %1649 = vmatprep.subr.mxu0 %v1256
    %1650 = vmatpush1.msra.mxu0 %v1255
    %1651 = vmatprep.subr.mxu0 %v1252
    %1652 = vmatpush1.msra.mxu0 %v1251
    %1653 = vmatprep.subr.mxu0 %v1248
    %1654 = vmatpush1.msra.mxu0 %v1247
    %1655 = vmatprep.subr.mxu0 %v1244
    %1656 = vmatpush1.msra.mxu0 %v1243
    %1657 = vmatprep.subr.mxu0 %v1240
    %1658 = vmatpush1.msra.mxu0 %v1239
    %1659 = vmatprep.subr.mxu0 %v1236
    %1660 = vmatpush1.msra.mxu0 %v1235
    %1661 = vmatprep.subr.mxu0 %v1232
    %1662 = vmatpush1.msra.mxu0 %v1231
    %1663 = vmatprep.subr.mxu0 %v1228
    %1664 = vmatpush1.msra.mxu0 %v1227
    %1665 = vmatprep.subr.mxu0 %v1224
    %1666 = vmatpush1.msra.mxu0 %v1223
    %1667 = vmatprep.subr.mxu0 %v1348
    %1668 = vmatpush2.msra.mxu0 %v1347
    %1669 = vmatprep.subr.mxu0 %v1344
    %1670 = vmatpush2.msra.mxu0 %v1343
    %1671 = vmatprep.subr.mxu0 %v1340
    %1672 = vmatpush2.msra.mxu0 %v1339
    %1673 = vmatprep.subr.mxu0 %v1336
    %1674 = vmatpush2.msra.mxu0 %v1335
    %1675 = vmatprep.subr.mxu0 %v1332
    %1676 = vmatpush2.msra.mxu0 %v1331
    %1677 = vmatprep.subr.mxu0 %v1328
    %1678 = vmatpush2.msra.mxu0 %v1327
    %1679 = vmatprep.subr.mxu0 %v1324
    %1680 = vmatpush2.msra.mxu0 %v1323
    %1681 = vmatprep.subr.mxu0 %v1320
    %1682 = vmatpush2.msra.mxu0 %v1319
    %1683 = vmatprep.subr.mxu0 %v1316
    %1684 = vmatpush2.msra.mxu0 %v1315
    %1685 = vmatprep.subr.mxu0 %v1312
    %1686 = vmatpush2.msra.mxu0 %v1311
    %1687 = vmatprep.subr.mxu0 %v1308
    %1688 = vmatpush2.msra.mxu0 %v1307
    %1689 = vmatprep.subr.mxu0 %v1304
    %1690 = vmatpush2.msra.mxu0 %v1303
    %1691 = vmatprep.subr.mxu0 %v1300
    %1692 = vmatpush2.msra.mxu0 %v1299
    %1693 = vmatprep.subr.mxu0 %v1296
    %1694 = vmatpush2.msra.mxu0 %v1295
    %1695 = vmatprep.subr.mxu0 %v1292
    %1696 = vmatpush2.msra.mxu0 %v1291
    %1697 = vmatprep.subr.mxu0 %v1288
    %1698 = vmatpush2.msra.mxu0 %v1287
    %1699 = vmatprep.mubr.f32.mxu0 %v1218
    %1700 = vmatmul.mubr.f32.gmra.mxu0 %v1217
    %v1701 = vpop.f32.mrf.mxu0
    %v1702 = vadd.f32 %v1488, %v1701
    %v1703 = vpop.f32.mrf.mxu0
    %v1704 = vadd.f32 %v1492, %v1703
    %1705 = vdwg.mxu0
    %1706 = vmatprep.subr.mxu0 %v1412
    %1707 = vmatpush1.msra.mxu0 %v1411
    %1708 = vmatprep.subr.mxu0 %v1408
    %1709 = vmatpush1.msra.mxu0 %v1407
    %1710 = vmatprep.subr.mxu0 %v1404
    %1711 = vmatpush1.msra.mxu0 %v1403
    %1712 = vmatprep.subr.mxu0 %v1400
    %1713 = vmatpush1.msra.mxu0 %v1399
    %1714 = vmatprep.subr.mxu0 %v1396
    %1715 = vmatpush1.msra.mxu0 %v1395
    %1716 = vmatprep.subr.mxu0 %v1392
    %1717 = vmatpush1.msra.mxu0 %v1391
    %1718 = vmatprep.subr.mxu0 %v1388
    %1719 = vmatpush1.msra.mxu0 %v1387
    %1720 = vmatprep.subr.mxu0 %v1384
    %1721 = vmatpush1.msra.mxu0 %v1383
    %1722 = vmatprep.subr.mxu0 %v1380
    %1723 = vmatpush1.msra.mxu0 %v1379
    %1724 = vmatprep.subr.mxu0 %v1376
    %1725 = vmatpush1.msra.mxu0 %v1375
    %1726 = vmatprep.subr.mxu0 %v1372
    %1727 = vmatpush1.msra.mxu0 %v1371
    %1728 = vmatprep.subr.mxu0 %v1368
    %1729 = vmatpush1.msra.mxu0 %v1367
    %1730 = vmatprep.subr.mxu0 %v1364
    %1731 = vmatpush1.msra.mxu0 %v1363
    %1732 = vmatprep.subr.mxu0 %v1360
    %1733 = vmatpush1.msra.mxu0 %v1359
    %1734 = vmatprep.subr.mxu0 %v1356
    %1735 = vmatpush1.msra.mxu0 %v1355
    %1736 = vmatprep.subr.mxu0 %v1352
    %1737 = vmatpush1.msra.mxu0 %v1351
    %1738 = vmatprep.subr.mxu0 %v1476
    %1739 = vmatpush2.msra.mxu0 %v1475
    %1740 = vmatprep.subr.mxu0 %v1472
    %1741 = vmatpush2.msra.mxu0 %v1471
    %1742 = vmatprep.subr.mxu0 %v1468
    %1743 = vmatpush2.msra.mxu0 %v1467
    %1744 = vmatprep.subr.mxu0 %v1464
    %1745 = vmatpush2.msra.mxu0 %v1463
    %1746 = vmatprep.subr.mxu0 %v1460
    %1747 = vmatpush2.msra.mxu0 %v1459
    %1748 = vmatprep.subr.mxu0 %v1456
    %1749 = vmatpush2.msra.mxu0 %v1455
    %1750 = vmatprep.subr.mxu0 %v1452
    %1751 = vmatpush2.msra.mxu0 %v1451
    %1752 = vmatprep.subr.mxu0 %v1448
    %1753 = vmatpush2.msra.mxu0 %v1447
    %1754 = vmatprep.subr.mxu0 %v1444
    %1755 = vmatpush2.msra.mxu0 %v1443
    %1756 = vmatprep.subr.mxu0 %v1440
    %1757 = vmatpush2.msra.mxu0 %v1439
    %1758 = vmatprep.subr.mxu0 %v1436
    %1759 = vmatpush2.msra.mxu0 %v1435
    %1760 = vmatprep.subr.mxu0 %v1432
    %1761 = vmatpush2.msra.mxu0 %v1431
    %1762 = vmatprep.subr.mxu0 %v1428
    %1763 = vmatpush2.msra.mxu0 %v1427
    %1764 = vmatprep.subr.mxu0 %v1424
    %1765 = vmatpush2.msra.mxu0 %v1423
    %1766 = vmatprep.subr.mxu0 %v1420
    %1767 = vmatpush2.msra.mxu0 %v1419
    %1768 = vmatprep.subr.mxu0 %v1416
    %1769 = vmatpush2.msra.mxu0 %v1415
    %1770 = vmatprep.mubr.f32.mxu0 %v1220
    %1771 = vmatmul.mubr.f32.gmra.mxu0 %v1219
    %v1772 = vpop.f32.mrf.mxu0
    %v1773 = vadd.f32 %v1702, %v1772
    %v1774 = vpop.f32.mrf.mxu0
    %v1775 = vadd.f32 %v1704, %v1774
    %1776 = vdwg.mxu0
    %v1777 = vrot.slane %v1631, 4
    %v1778 = vadd.f32 %v1631, %v1777
    %v1779 = vrot.slane %v1778, 2
    %v1780 = vadd.f32 %v1778, %v1779
    %v1781 = vrot.slane %v1780, 1
    %v1782 = vadd.f32 %v1780, %v1781
    %v1783 = vrot.slane %v1633, 4
    %v1784 = vadd.f32 %v1633, %v1783
    %v1785 = vrot.slane %v1784, 2
    %v1786 = vadd.f32 %v1784, %v1785
    %v1787 = vrot.slane %v1786, 1
    %v1788 = vadd.f32 %v1786, %v1787
    %v1789 = vrot.slane %v1773, 4
    %v1790 = vadd.f32 %v1773, %v1789
    %v1791 = vrot.slane %v1790, 2
    %v1792 = vadd.f32 %v1790, %v1791
    %v1793 = vrot.slane %v1792, 1
    %v1794 = vadd.f32 %v1792, %v1793
    %v1795 = vrot.slane %v1775, 4
    %v1796 = vadd.f32 %v1775, %v1795
    %v1797 = vrot.slane %v1796, 2
    %v1798 = vadd.f32 %v1796, %v1797
    %v1799 = vrot.slane %v1798, 1
    %v1800 = vadd.f32 %v1798, %v1799
    %v1801 = vmul.f32 %v1782, %v392
    %v1802 = vmul.f32 %v1788, %v392
    %v1803 = vmul.f32 %v1794, %v392
    %v1804 = vmul.f32 %v1800, %v392
    %v1805 = vmul.f32 %v1631, %v1631
    %v1806 = vmul.f32 %v1633, %v1633
    %v1807 = vmul.f32 %v1773, %v1773
    %v1808 = vmul.f32 %v1775, %v1775
    %v1809 = vrot.slane %v1805, 4
    %v1810 = vadd.f32 %v1805, %v1809
    %v1811 = vrot.slane %v1810, 2
    %v1812 = vadd.f32 %v1810, %v1811
    %v1813 = vrot.slane %v1812, 1
    %v1814 = vadd.f32 %v1812, %v1813
    %v1815 = vrot.slane %v1806, 4
    %v1816 = vadd.f32 %v1806, %v1815
    %v1817 = vrot.slane %v1816, 2
    %v1818 = vadd.f32 %v1816, %v1817
    %v1819 = vrot.slane %v1818, 1
    %v1820 = vadd.f32 %v1818, %v1819
    %v1821 = vrot.slane %v1807, 4
    %v1822 = vadd.f32 %v1807, %v1821
    %v1823 = vrot.slane %v1822, 2
    %v1824 = vadd.f32 %v1822, %v1823
    %v1825 = vrot.slane %v1824, 1
    %v1826 = vadd.f32 %v1824, %v1825
    %v1827 = vrot.slane %v1808, 4
    %v1828 = vadd.f32 %v1808, %v1827
    %v1829 = vrot.slane %v1828, 2
    %v1830 = vadd.f32 %v1828, %v1829
    %v1831 = vrot.slane %v1830, 1
    %v1832 = vadd.f32 %v1830, %v1831
    %v1833 = vmul.f32 %v1814, %v392
    %v1834 = vmul.f32 %v1820, %v392
    %v1835 = vmul.f32 %v1826, %v392
    %v1836 = vmul.f32 %v1832, %v392
    %v1837 = vmul.f32 %v1801, %v1801
    %v1838 = vmul.f32 %v1802, %v1802
    %v1839 = vmul.f32 %v1803, %v1803
    %v1840 = vmul.f32 %v1804, %v1804
    %v1841 = vsub.f32 %v1833, %v1837
    %v1842 = vsub.f32 %v1834, %v1838
    %v1843 = vsub.f32 %v1835, %v1839
    %v1844 = vsub.f32 %v1836, %v1840
    %v1845 = vadd.f32 %v1841, 1e-05
    %v1846 = vadd.f32 %v1842, 1e-05
    %v1847 = vadd.f32 %v1843, 1e-05
    %v1848 = vadd.f32 %v1844, 1e-05
    %v1849 = vrsqrt.pop %v1845
    %v1850 = vrsqrt.pop %v1846
    %v1851 = vrsqrt.pop %v1847
    %v1852 = vrsqrt.pop %v1848
    %v1853 = vmul.f32 %v178, %v1849
    %v1854 = vmul.f32 %v179, %v1850
    %v1855 = vmul.f32 %v180, %v1851
    %v1856 = vmul.f32 %v181, %v1852
    %v1857 = vmul.f32 %v1801, %v1853
    %v1858 = vmul.f32 %v1802, %v1854
    %v1859 = vmul.f32 %v1803, %v1855
    %v1860 = vmul.f32 %v1804, %v1856
    %v1865 = vrot.slane %v1857, 7
    %v1866 = vrot.slane %v1858, 7
    %v1867 = vrot.slane %v1859, 7
    %v1868 = vrot.slane %v1860, 7
    %v1873 = vsub.f32 %v182, %v1865
    %v1874 = vsub.f32 %v183, %v1866
    %v1875 = vsub.f32 %v184, %v1867
    %v1876 = vsub.f32 %v185, %v1868
    %v1877 = vlaneseq
    %v1878 = vshrl.u32 %v1877, 7
    %v1879 = vsub.s32 7, %v1878
    %v1880 = vrot.slane %v1853, %v1879
    %v1881 = vlaneseq
    %v1882 = vshrl.u32 %v1881, 7
    %v1883 = vsub.s32 7, %v1882
    %v1884 = vrot.slane %v1854, %v1883
    %v1885 = vlaneseq
    %v1886 = vshrl.u32 %v1885, 7
    %v1887 = vsub.s32 7, %v1886
    %v1888 = vrot.slane %v1855, %v1887
    %v1889 = vlaneseq
    %v1890 = vshrl.u32 %v1889, 7
    %v1891 = vsub.s32 7, %v1890
    %v1892 = vrot.slane %v1856, %v1891
    %v1893 = vmul.f32 %v1631, %v1880
    %v1894 = vmul.f32 %v1633, %v1884
    %v1895 = vmul.f32 %v1773, %v1888
    %v1896 = vmul.f32 %v1775, %v1892
    %v1897 = vlaneseq
    %v1898 = vshrl.u32 %v1897, 7
    %v1899 = vsub.s32 0, %v1898
    %v1900 = vrot.slane %v1873, %v1899
    %v1901 = vlaneseq
    %v1902 = vshrl.u32 %v1901, 7
    %v1903 = vsub.s32 0, %v1902
    %v1904 = vrot.slane %v1874, %v1903
    %v1905 = vlaneseq
    %v1906 = vshrl.u32 %v1905, 7
    %v1907 = vsub.s32 0, %v1906
    %v1908 = vrot.slane %v1875, %v1907
    %v1909 = vlaneseq
    %v1910 = vshrl.u32 %v1909, 7
    %v1911 = vsub.s32 0, %v1910
    %v1912 = vrot.slane %v1876, %v1911
    %v1913 = vadd.f32 %v1893, %v1900
    %v1914 = vadd.f32 %v1894, %v1904
    %v1915 = vadd.f32 %v1895, %v1908
    %v1916 = vadd.f32 %v1896, %v1912
    %v1917 = vmax.f32 %v1913, 0.0
    %v1918 = vmax.f32 %v1914, 0.0
    %v1919 = vmax.f32 %v1915, 0.0
    %v1920 = vmax.f32 %v1916, 0.0
    %s1921 = scalar_lea.vmem [#allocation9], 32
    %v1922 = vld [vmem:[%s1921] sm:$0xff]
    %v1923 = vld [vmem:[%s1921 + $0x8] sm:$0xff]
    %v1924 = vld [vmem:[%s1921 + $0x10] sm:$0xff]
    %v1925 = vld [vmem:[%s1921 + $0x18] sm:$0xff]
    %v1926 = vmul.f32 %v1917, %v1922
    %v1927 = vmul.f32 %v1918, %v1923
    %v1928 = vmul.f32 %v1919, %v1924
    %v1929 = vmul.f32 %v1920, %v1925
    %v1930 = vlaneseq
    %v1931 = vshrl.u32 %v1930, 7
    %v1932 = vsub.s32 1, %v1931
    %v1933 = vrot.slane %v182, %v1932
    %v1934 = vlaneseq
    %v1935 = vshrl.u32 %v1934, 7
    %v1936 = vsub.s32 1, %v1935
    %v1937 = vrot.slane %v183, %v1936
    %v1938 = vlaneseq
    %v1939 = vshrl.u32 %v1938, 7
    %v1940 = vsub.s32 1, %v1939
    %v1941 = vrot.slane %v184, %v1940
    %v1942 = vlaneseq
    %v1943 = vshrl.u32 %v1942, 7
    %v1944 = vsub.s32 1, %v1943
    %v1945 = vrot.slane %v185, %v1944
    %v1946 = vmul.f32 %v1926, %v1933
    %v1947 = vmul.f32 %v1927, %v1937
    %v1948 = vmul.f32 %v1928, %v1941
    %v1949 = vmul.f32 %v1929, %v1945
    %v1950 = vadd.f32 %v1946, %v1947
    %v1951 = vadd.f32 %v1950, %v1948
    %v1952 = vadd.f32 %v1951, %v1949
    %1953 = vadd.xlane.f32.xlu0 %v1952
    %v1954 = vpop.xlane.xlu0 %1953
    %v1955 = vlaneseq
    %v1956 = vshrl.u32 %v1955, 7
    %v1957 = vsub.s32 2, %v1956
    %v1958 = vrot.slane %v182, %v1957
    %v1959 = vadd.f32 %v1954, %v1958
    %vm1960 = vcmask 7168
    %1961 = vst.msk [vmem:[%s7] sm:$0xff] %vm1960, %v1959
    // Predicated region
    $region50: #{tpu_custom_call.1} parent=1 // pred_check
      _
    $region51: #{tpu_custom_call.1} parent=1 // pred_check_branch
      %1963 = sbr.rel (0) target = $region53
    $region52: #{tpu_custom_call.1} parent=1 // pred_region
      _
    $region53: #{tpu_custom_call.1} parent=1 // pred_fallthru
      _
    // Predicated region
    $region54: #{tpu_custom_call.1} parent=1 // pred_check
      _
    $region55: #{tpu_custom_call.1} parent=1 // pred_check_branch
      %1965 = sbr.rel (0) target = $region57
    $region56: #{tpu_custom_call.1} parent=1 // pred_region
      _
    $region57: #{tpu_custom_call.1} parent=1 // pred_fallthru
      _
    %1966 = vsyncpa [#allocation3], 1
    %1967 = vsyncpa [#allocation5], 1
    %1968 = vsyncpa [#allocation8], 1

</llo_original>
